<compile_context>
chip_gen: v5e
topology: v5e:2x2
jax: 0.10.0
libtpu: 0.0.40
codegen_flags: <defaults>
</compile_context>

<pallas_src>
import math

import jax
import jax.numpy as jnp
import numpy as np
from jax.experimental import pallas as pl
from jax.experimental.pallas import tpu as pltpu

# ----------------------------- config (small synthetic shapes) --------------------
B = 2      # batch
S = 8      # sequence length
H = 32     # hidden size
V = 512    # vocab size (multiple of 128 -> lane-dense output). Production: pad 30522 -> 30720.
TV = 256   # vocab tile width (multiple of 128). Production: sweep 2048-7680; the constraint
           # is grid-step overhead vs. gating granularity, not VMEM.
TB = 8     # batch tile (>= 8 so every (TB, TV) store is a full (8, 128) vreg)

# synthetic special-token ids (tokenizer.{pad,unk,cls,sep}_token_id)
PAD_ID, UNK_ID, CLS_ID, SEP_ID = 0, 1, 2, 3

assert V % TV == 0 and TV % 128 == 0
assert max(PAD_ID, UNK_ID, CLS_ID, SEP_ID) < TV  # special ids all live in vocab tile 0

VMEM_LIMIT = 32 * 1024 * 1024  # explicit (v5e default is 16 MiB); raise when TB/TV/S grow.


# ----------------------------- pass 1: scores + dense normalize -------------------
def score_dense_kernel(hid_ref,     # VMEM (TB, S, H) f32
                       sent_ref,    # VMEM (TB, H) f32
                       w_ref,       # VMEM (1, H) f32
                       scores_ref,  # VMEM (TB, S) f32   out
                       dense_ref):  # VMEM (TB, H) f32   out
    hid = hid_ref[...]                                          # (TB, S, H)
    w = w_ref[...]                                              # (1, H)
    # token_weights = relu(hid @ w.T): N=1, so keep it as a VPU multiply + lane reduce
    # (an MXU matmul with N=1 would use <1% of the array).
    scores_ref[...] = jnp.maximum(
        jnp.sum(hid * w[None, :, :], axis=-1), 0.0)             # (TB, S)

    # dense head: F.normalize(x, dim=-1, eps=1e-12)
    x = sent_ref[...]                                           # (TB, H)
    nrm = jnp.sqrt(jnp.sum(x * x, axis=-1, keepdims=True))
    dense_ref[...] = x * pl.reciprocal(jnp.maximum(nrm, 1e-12), approx=False)


# ----------------------------- pass 2: sparse BOW scatter -------------------------
def sparse_scatter_kernel(ids_smem,     # SMEM (B_pad, S) int32   (scalar prefetch)
                          ids_ref,      # VMEM (TB, S) int32
                          scores_ref,   # VMEM (TB, S) f32
                          sparse_ref):  # VMEM (TB, TV) f32       out
    bt = pl.program_id(0)
    vt = pl.program_id(1)
    tile_base = vt * TV

    lane_ids = jax.lax.broadcasted_iota(jnp.int32, (TB, TV), 1) + tile_base

    # scatter_reduce('amax', include_self=True) into zeros. NOTE: the 0.0 fill inside
    # jnp.where (and the zero init) is only correct because scores are already ReLU'd
    # (non-negative); if the activation ever changes, these semantics break.
    sparse_ref[...] = jnp.zeros_like(sparse_ref)

    # S is small & static here so the loop is Python-unrolled; at production S (~512)
    # use lax.fori_loop(..., unroll=True) over token positions instead.
    for s in range(S):
        # Scalar gate (SMEM reads, scalar slots): does ANY row of this batch tile put
        # token position s into this vocab tile? Each token lands in exactly one of
        # V/TV tiles, so this skips the lane-wide work on all non-matching tiles.
        hits = []
        for r in range(TB):
            tok = ids_smem[bt * TB + r, s]
            hits.append(jnp.logical_and(tok >= tile_base, tok < tile_base + TV))
        gate = hits[0]
        for h in hits[1:]:
            gate = jnp.logical_or(gate, h)

        @pl.when(gate)
        def _():
            ids_col = ids_ref[:, pl.ds(s, 1)]                   # (TB, 1) int32
            sc_col = scores_ref[:, pl.ds(s, 1)]                 # (TB, 1) f32
            hit = ids_col == lane_ids                           # (TB, TV)
            sparse_ref[...] = jnp.maximum(sparse_ref[...],
                                          jnp.where(hit, sc_col, 0.0))

    # index_fill of the 4 special vocab ids; they all sit in vocab tile 0.
    @pl.when(vt == 0)
    def _():
        col = jax.lax.broadcasted_iota(jnp.int32, (1, TV), 1)
        special = ((col == PAD_ID) | (col == UNK_ID) |
                   (col == CLS_ID) | (col == SEP_ID))
        sparse_ref[...] = jnp.where(special, 0.0, sparse_ref[...])


# ----------------------------- wrapper ---------------------------------------------
def dense_sparse_encode(sentence_embedding, token_embeddings, input_ids, sparse_weight):
    """Returns (dense_vecs [B,H], sparse_vecs [B,V])."""
    b_in = input_ids.shape[0]
    b_pad = ((b_in + TB - 1) // TB) * TB
    pad = b_pad - b_in
    if pad:
        # Pad the batch to a multiple of TB so every output block is a full (8, 128) vreg.
        token_embeddings = jnp.pad(token_embeddings, ((0, pad), (0, 0), (0, 0)))
        sentence_embedding = jnp.pad(sentence_embedding, ((0, pad), (0, 0)))
        input_ids = jnp.pad(input_ids, ((0, pad), (0, 0)))      # pads with 0 (= PAD id)
    ids = input_ids.astype(jnp.int32)

    # ---- pass 1: per-token scores + dense normalize (tiny) -------------------------
    scores, dense_pad = pl.pallas_call(
        score_dense_kernel,
        out_shape=(
            jax.ShapeDtypeStruct((b_pad, S), jnp.float32),
            jax.ShapeDtypeStruct((b_pad, H), jnp.float32),
        ),
        grid_spec=pltpu.PrefetchScalarGridSpec(
            num_scalar_prefetch=0,
            grid=(b_pad // TB,),
            in_specs=[
                pl.BlockSpec((TB, S, H), lambda i: (i, 0, 0)),  # token embeddings
                pl.BlockSpec((TB, H), lambda i: (i, 0)),        # sentence embedding
                pl.BlockSpec((1, H), lambda i: (0, 0)),         # sparse_linear weight
            ],
            out_specs=[
                pl.BlockSpec((TB, S), lambda i: (i, 0)),
                pl.BlockSpec((TB, H), lambda i: (i, 0)),
            ],
        ),
        compiler_params=pltpu.CompilerParams(
            dimension_semantics=("parallel",),
            vmem_limit_bytes=VMEM_LIMIT,
        ),
    )(token_embeddings, sentence_embedding, sparse_weight)

    # ---- pass 2: sparse scatter (hot) -----------------------------------------------
    # No cross-step residency -> both grid axes can be "parallel" (megacore on v7x can
    # split either the batch-tile or the vocab-tile axis).
    sparse_pad = pl.pallas_call(
        sparse_scatter_kernel,
        out_shape=jax.ShapeDtypeStruct((b_pad, V), jnp.float32),
        grid_spec=pltpu.PrefetchScalarGridSpec(
            num_scalar_prefetch=1,
            grid=(b_pad // TB, V // TV),
            in_specs=[
                pl.BlockSpec((TB, S), lambda b, v, ids_sm: (b, 0)),   # ids (VMEM copy)
                pl.BlockSpec((TB, S), lambda b, v, ids_sm: (b, 0)),   # scores
            ],
            out_specs=pl.BlockSpec((TB, TV), lambda b, v, ids_sm: (b, v)),
        ),
        compiler_params=pltpu.CompilerParams(
            dimension_semantics=("parallel", "parallel"),
            vmem_limit_bytes=VMEM_LIMIT,
        ),
    )(ids, ids, scores)

    # Slice the batch padding back off (production: also slice V back to the true vocab).
    return dense_pad[:b_in], sparse_pad[:b_in]


# ----------------------------- main -------------------------------------------------
if __name__ == "__main__":
    key = jax.random.PRNGKey(0)
    k_hid, k_sent, k_ids, k_w = jax.random.split(key, 4)

    # Synthetic backbone outputs (stand-ins for st_model forward outputs).
    token_embeddings = jax.random.normal(k_hid, (B, S, H), dtype=jnp.float32)
    sentence_embedding = jax.random.normal(k_sent, (B, H), dtype=jnp.float32)
    input_ids = jax.random.randint(k_ids, (B, S), 0, V, dtype=jnp.int32)

    # sparse_linear: nn.Linear(H, 1, bias=False), kaiming_uniform_(a=0, fan_in, relu)
    bound = math.sqrt(2.0) * math.sqrt(3.0 / H)
    sparse_weight = jax.random.uniform(
        k_w, (1, H), minval=-bound, maxval=bound, dtype=jnp.float32
    )

    dense_vecs, sparse_vecs = jax.jit(dense_sparse_encode)(
        sentence_embedding, token_embeddings, input_ids, sparse_weight
    )
    jax.block_until_ready((dense_vecs, sparse_vecs))

    # ----------------- reference check (plain numpy) -----------------
    hid_np = np.asarray(token_embeddings)
    ids_np = np.asarray(input_ids)
    w_np = np.asarray(sparse_weight)
    sent_np = np.asarray(sentence_embedding)

    scores_np = np.maximum(hid_np @ w_np.T, 0.0)[..., 0]          # (B, S)
    sparse_ref = np.zeros((B, V), dtype=np.float32)
    for b in range(B):
        for s in range(S):
            v = int(ids_np[b, s])
            sparse_ref[b, v] = max(sparse_ref[b, v], scores_np[b, s])
    sparse_ref[:, [PAD_ID, UNK_ID, CLS_ID, SEP_ID]] = 0.0

    nrm = np.sqrt((sent_np ** 2).sum(axis=-1, keepdims=True))
    dense_ref = sent_np / np.maximum(nrm, 1e-12)

    np.testing.assert_allclose(np.asarray(sparse_vecs), sparse_ref, rtol=1e-5, atol=1e-5)
    np.testing.assert_allclose(np.asarray(dense_vecs), dense_ref, rtol=1e-5, atol=1e-5)

    print("KERNEL_OK")
</pallas_src>

<mosaic_0001>
module attributes {stable_mosaic.version = 11 : i64} {
  func.func @score_dense_kernel(%arg0: i32, %arg1: memref<8x8x32xf32, #tpu.memory_space<vmem>>, %arg2: memref<8x32xf32, #tpu.memory_space<vmem>>, %arg3: memref<1x32xf32, #tpu.memory_space<vmem>>, %arg4: memref<8x8xf32, #tpu.memory_space<vmem>>, %arg5: memref<8x32xf32, #tpu.memory_space<vmem>>) attributes {dimension_semantics = [#tpu.dimension_semantics<parallel>], iteration_bounds = array<i64: 1>, scalar_prefetch = 0 : i64, scratch_operands = 0 : i64, tpu.core_type = #tpu.core_type<tc>, window_params = [{transform_indices = @transform_0, window_bounds = array<i64: 8, 8, 32>}, {transform_indices = @transform_1, window_bounds = array<i64: 8, 32>}, {pipeline_mode = #tpu.pipeline_mode<synchronous>, transform_indices = @transform_2, window_bounds = array<i64: 1, 32>}, {transform_indices = @transform_3, window_bounds = array<i64: 8, 8>}, {transform_indices = @transform_4, window_bounds = array<i64: 8, 32>}]} {
    %c0 = arith.constant 0 : index
    %c0_0 = arith.constant 0 : index
    %c0_1 = arith.constant 0 : index
    %0 = vector.load %arg1[%c0, %c0_0, %c0_1] : memref<8x8x32xf32, #tpu.memory_space<vmem>>, vector<8x8x32xf32>
    %c0_2 = arith.constant 0 : index
    %c0_3 = arith.constant 0 : index
    %1 = vector.load %arg3[%c0_2, %c0_3] : memref<1x32xf32, #tpu.memory_space<vmem>>, vector<1x32xf32>
    %2 = vector.shape_cast %1 : vector<1x32xf32> to vector<1x1x32xf32>
    %3 = vector.broadcast %2 : vector<1x1x32xf32> to vector<8x8x32xf32>
    %4 = arith.mulf %0, %3 : vector<8x8x32xf32>
    %cst = arith.constant dense<0.000000e+00> : vector<8x8xf32>
    %5 = vector.multi_reduction <add>, %4, %cst [2] : vector<8x8x32xf32> to vector<8x8xf32>
    %cst_4 = arith.constant 0.000000e+00 : f32
    %6 = vector.broadcast %cst_4 : f32 to vector<8x8xf32>
    %7 = arith.maximumf %5, %6 : vector<8x8xf32>
    %c0_5 = arith.constant 0 : index
    %c0_6 = arith.constant 0 : index
    %8 = vector.load %arg4[%c0_5, %c0_6] : memref<8x8xf32, #tpu.memory_space<vmem>>, vector<8x8xf32>
    tpu.vector_store %arg4[%c0_5, %c0_6], %7 {strides = array<i32>} : memref<8x8xf32, #tpu.memory_space<vmem>>, vector<8x8xf32>,
    %c0_7 = arith.constant 0 : index
    %c0_8 = arith.constant 0 : index
    %9 = vector.load %arg2[%c0_7, %c0_8] : memref<8x32xf32, #tpu.memory_space<vmem>>, vector<8x32xf32>
    %10 = arith.mulf %9, %9 : vector<8x32xf32>
    %cst_9 = arith.constant dense<0.000000e+00> : vector<8xf32>
    %11 = vector.multi_reduction <add>, %10, %cst_9 [1] : vector<8x32xf32> to vector<8xf32>
    %12 = vector.shape_cast %11 : vector<8xf32> to vector<8x1xf32>
    %13 = math.sqrt %12 : vector<8x1xf32>
    %cst_10 = arith.constant 9.99999996E-13 : f32
    %14 = vector.broadcast %cst_10 : f32 to vector<8x1xf32>
    %15 = arith.maximumf %13, %14 : vector<8x1xf32>
    %16 = tpu.reciprocal %15 : vector<8x1xf32> -> vector<8x1xf32>
    %17 = vector.broadcast %16 : vector<8x1xf32> to vector<8x32xf32>
    %18 = arith.mulf %9, %17 : vector<8x32xf32>
    %c0_11 = arith.constant 0 : index
    %c0_12 = arith.constant 0 : index
    %19 = vector.load %arg5[%c0_11, %c0_12] : memref<8x32xf32, #tpu.memory_space<vmem>>, vector<8x32xf32>
    tpu.vector_store %arg5[%c0_11, %c0_12], %18 {strides = array<i32>} : memref<8x32xf32, #tpu.memory_space<vmem>>, vector<8x32xf32>,
    return
  }
  func.func @transform_0(%arg0: i32) -> (i32, i32, i32) {
    %c0_i32 = arith.constant 0 : i32
    %c0_i32_0 = arith.constant 0 : i32
    %c0_i32_1 = arith.constant 0 : i32
    return %arg0, %c0_i32, %c0_i32_0 : i32, i32, i32
  }
  func.func @transform_1(%arg0: i32) -> (i32, i32) {
    %c0_i32 = arith.constant 0 : i32
    %c0_i32_0 = arith.constant 0 : i32
    return %arg0, %c0_i32 : i32, i32
  }
  func.func @transform_2(%arg0: i32) -> (i32, i32) {
    %c0_i32 = arith.constant 0 : i32
    %c0_i32_0 = arith.constant 0 : i32
    %c0_i32_1 = arith.constant 0 : i32
    return %c0_i32, %c0_i32_0 : i32, i32
  }
  func.func @transform_3(%arg0: i32) -> (i32, i32) {
    %c0_i32 = arith.constant 0 : i32
    %c0_i32_0 = arith.constant 0 : i32
    return %arg0, %c0_i32 : i32, i32
  }
  func.func @transform_4(%arg0: i32) -> (i32, i32) {
    %c0_i32 = arith.constant 0 : i32
    %c0_i32_0 = arith.constant 0 : i32
    return %arg0, %c0_i32 : i32, i32
  }
}

module attributes {stable_mosaic.version = 11 : i64} {
  func.func @sparse_scatter_kernel(%arg0: i32, %arg1: i32, %arg2: memref<8x8xi32, #tpu.memory_space<smem>>, %arg3: memref<8x8xi32, #tpu.memory_space<vmem>>, %arg4: memref<8x8xf32, #tpu.memory_space<vmem>>, %arg5: memref<8x256xf32, #tpu.memory_space<vmem>>) attributes {dimension_semantics = [#tpu.dimension_semantics<parallel>, #tpu.dimension_semantics<parallel>], iteration_bounds = array<i64: 1, 2>, scalar_prefetch = 1 : i64, scratch_operands = 0 : i64, tpu.core_type = #tpu.core_type<tc>, window_params = [{transform_indices = @transform_0, window_bounds = array<i64: 8, 8>}, {transform_indices = @transform_1, window_bounds = array<i64: 8, 8>}, {transform_indices = @transform_2, window_bounds = array<i64: 8, 256>}]} {
    %c256_i32 = arith.constant 256 : i32
    %0 = arith.muli %arg1, %c256_i32 : i32
    %1 = tpu.iota {dimensions = array<i32: 1>} : vector<8x256xi32>
    %2 = vector.broadcast %0 : i32 to vector<8x256xi32>
    %3 = arith.addi %1, %2 : vector<8x256xi32>
    %cst = arith.constant 0.000000e+00 : f32
    %4 = vector.broadcast %cst : f32 to vector<8x256xf32>
    %c0 = arith.constant 0 : index
    %c0_0 = arith.constant 0 : index
    %5 = vector.load %arg5[%c0, %c0_0] : memref<8x256xf32, #tpu.memory_space<vmem>>, vector<8x256xf32>
    tpu.vector_store %arg5[%c0, %c0_0], %4 {strides = array<i32>} : memref<8x256xf32, #tpu.memory_space<vmem>>, vector<8x256xf32>,
    %c8_i32 = arith.constant 8 : i32
    %6 = arith.muli %arg0, %c8_i32 : i32
    %c0_i32 = arith.constant 0 : i32
    %7 = arith.addi %6, %c0_i32 : i32
    %8 = arith.index_cast %7 : i32 to index
    %c0_1 = arith.constant 0 : index
    %9 = memref.load %arg2[%8, %c0_1] : memref<8x8xi32, #tpu.memory_space<smem>>
    %10 = arith.cmpi sge, %9, %0 : i32
    %c256_i32_2 = arith.constant 256 : i32
    %11 = arith.addi %0, %c256_i32_2 : i32
    %12 = arith.cmpi slt, %9, %11 : i32
    %13 = arith.andi %10, %12 : i1
    %c8_i32_3 = arith.constant 8 : i32
    %14 = arith.muli %arg0, %c8_i32_3 : i32
    %c1_i32 = arith.constant 1 : i32
    %15 = arith.addi %14, %c1_i32 : i32
    %16 = arith.index_cast %15 : i32 to index
    %c0_4 = arith.constant 0 : index
    %17 = memref.load %arg2[%16, %c0_4] : memref<8x8xi32, #tpu.memory_space<smem>>
    %18 = arith.cmpi sge, %17, %0 : i32
    %c256_i32_5 = arith.constant 256 : i32
    %19 = arith.addi %0, %c256_i32_5 : i32
    %20 = arith.cmpi slt, %17, %19 : i32
    %21 = arith.andi %18, %20 : i1
    %c8_i32_6 = arith.constant 8 : i32
    %22 = arith.muli %arg0, %c8_i32_6 : i32
    %c2_i32 = arith.constant 2 : i32
    %23 = arith.addi %22, %c2_i32 : i32
    %24 = arith.index_cast %23 : i32 to index
    %c0_7 = arith.constant 0 : index
    %25 = memref.load %arg2[%24, %c0_7] : memref<8x8xi32, #tpu.memory_space<smem>>
    %26 = arith.cmpi sge, %25, %0 : i32
    %c256_i32_8 = arith.constant 256 : i32
    %27 = arith.addi %0, %c256_i32_8 : i32
    %28 = arith.cmpi slt, %25, %27 : i32
    %29 = arith.andi %26, %28 : i1
    %c8_i32_9 = arith.constant 8 : i32
    %30 = arith.muli %arg0, %c8_i32_9 : i32
    %c3_i32 = arith.constant 3 : i32
    %31 = arith.addi %30, %c3_i32 : i32
    %32 = arith.index_cast %31 : i32 to index
    %c0_10 = arith.constant 0 : index
    %33 = memref.load %arg2[%32, %c0_10] : memref<8x8xi32, #tpu.memory_space<smem>>
    %34 = arith.cmpi sge, %33, %0 : i32
    %c256_i32_11 = arith.constant 256 : i32
    %35 = arith.addi %0, %c256_i32_11 : i32
    %36 = arith.cmpi slt, %33, %35 : i32
    %37 = arith.andi %34, %36 : i1
    %c8_i32_12 = arith.constant 8 : i32
    %38 = arith.muli %arg0, %c8_i32_12 : i32
    %c4_i32 = arith.constant 4 : i32
    %39 = arith.addi %38, %c4_i32 : i32
    %40 = arith.index_cast %39 : i32 to index
    %c0_13 = arith.constant 0 : index
    %41 = memref.load %arg2[%40, %c0_13] : memref<8x8xi32, #tpu.memory_space<smem>>
    %42 = arith.cmpi sge, %41, %0 : i32
    %c256_i32_14 = arith.constant 256 : i32
    %43 = arith.addi %0, %c256_i32_14 : i32
    %44 = arith.cmpi slt, %41, %43 : i32
    %45 = arith.andi %42, %44 : i1
    %c8_i32_15 = arith.constant 8 : i32
    %46 = arith.muli %arg0, %c8_i32_15 : i32
    %c5_i32 = arith.constant 5 : i32
    %47 = arith.addi %46, %c5_i32 : i32
    %48 = arith.index_cast %47 : i32 to index
    %c0_16 = arith.constant 0 : index
    %49 = memref.load %arg2[%48, %c0_16] : memref<8x8xi32, #tpu.memory_space<smem>>
    %50 = arith.cmpi sge, %49, %0 : i32
    %c256_i32_17 = arith.constant 256 : i32
    %51 = arith.addi %0, %c256_i32_17 : i32
    %52 = arith.cmpi slt, %49, %51 : i32
    %53 = arith.andi %50, %52 : i1
    %c8_i32_18 = arith.constant 8 : i32
    %54 = arith.muli %arg0, %c8_i32_18 : i32
    %c6_i32 = arith.constant 6 : i32
    %55 = arith.addi %54, %c6_i32 : i32
    %56 = arith.index_cast %55 : i32 to index
    %c0_19 = arith.constant 0 : index
    %57 = memref.load %arg2[%56, %c0_19] : memref<8x8xi32, #tpu.memory_space<smem>>
    %58 = arith.cmpi sge, %57, %0 : i32
    %c256_i32_20 = arith.constant 256 : i32
    %59 = arith.addi %0, %c256_i32_20 : i32
    %60 = arith.cmpi slt, %57, %59 : i32
    %61 = arith.andi %58, %60 : i1
    %c8_i32_21 = arith.constant 8 : i32
    %62 = arith.muli %arg0, %c8_i32_21 : i32
    %c7_i32 = arith.constant 7 : i32
    %63 = arith.addi %62, %c7_i32 : i32
    %64 = arith.index_cast %63 : i32 to index
    %c0_22 = arith.constant 0 : index
    %65 = memref.load %arg2[%64, %c0_22] : memref<8x8xi32, #tpu.memory_space<smem>>
    %66 = arith.cmpi sge, %65, %0 : i32
    %c256_i32_23 = arith.constant 256 : i32
    %67 = arith.addi %0, %c256_i32_23 : i32
    %68 = arith.cmpi slt, %65, %67 : i32
    %69 = arith.andi %66, %68 : i1
    %70 = arith.ori %13, %21 : i1
    %71 = arith.ori %70, %29 : i1
    %72 = arith.ori %71, %37 : i1
    %73 = arith.ori %72, %45 : i1
    %74 = arith.ori %73, %53 : i1
    %75 = arith.ori %74, %61 : i1
    %76 = arith.ori %75, %69 : i1
    %77 = arith.extui %76 : i1 to i32
    %c0_i32_24 = arith.constant 0 : i32
    %78 = arith.cmpi ne, %77, %c0_i32_24 : i32
    scf.if %78 {
      %c0_251 = arith.constant 0 : index
      %c0_252 = arith.constant 0 : index
      %593 = vector.load %arg3[%c0_251, %c0_252] : memref<8x8xi32, #tpu.memory_space<vmem>>, vector<8x1xi32>
      %c0_253 = arith.constant 0 : index
      %c0_254 = arith.constant 0 : index
      %594 = vector.load %arg4[%c0_253, %c0_254] : memref<8x8xf32, #tpu.memory_space<vmem>>, vector<8x1xf32>
      %595 = vector.broadcast %593 : vector<8x1xi32> to vector<8x256xi32>
      %596 = arith.cmpi eq, %595, %3 : vector<8x256xi32>
      %c0_255 = arith.constant 0 : index
      %c0_256 = arith.constant 0 : index
      %597 = vector.load %arg5[%c0_255, %c0_256] : memref<8x256xf32, #tpu.memory_space<vmem>>, vector<8x256xf32>
      %cst_257 = arith.constant 0.000000e+00 : f32
      %598 = vector.shape_cast %594 : vector<8x1xf32> to vector<8x1xf32>
      %599 = vector.broadcast %598 : vector<8x1xf32> to vector<8x256xf32>
      %600 = vector.broadcast %cst_257 : f32 to vector<8x256xf32>
      %601 = arith.select %596, %599, %600 : vector<8x256xi1>, vector<8x256xf32>
      %602 = arith.maximumf %597, %601 : vector<8x256xf32>
      %c0_258 = arith.constant 0 : index
      %c0_259 = arith.constant 0 : index
      %603 = vector.load %arg5[%c0_258, %c0_259] : memref<8x256xf32, #tpu.memory_space<vmem>>, vector<8x256xf32>
      tpu.vector_store %arg5[%c0_258, %c0_259], %602 {strides = array<i32>} : memref<8x256xf32, #tpu.memory_space<vmem>>, vector<8x256xf32>,
    } else {
    }
    %c8_i32_25 = arith.constant 8 : i32
    %79 = arith.muli %arg0, %c8_i32_25 : i32
    %c0_i32_26 = arith.constant 0 : i32
    %80 = arith.addi %79, %c0_i32_26 : i32
    %81 = arith.index_cast %80 : i32 to index
    %c1 = arith.constant 1 : index
    %82 = memref.load %arg2[%81, %c1] : memref<8x8xi32, #tpu.memory_space<smem>>
    %83 = arith.cmpi sge, %82, %0 : i32
    %c256_i32_27 = arith.constant 256 : i32
    %84 = arith.addi %0, %c256_i32_27 : i32
    %85 = arith.cmpi slt, %82, %84 : i32
    %86 = arith.andi %83, %85 : i1
    %c8_i32_28 = arith.constant 8 : i32
    %87 = arith.muli %arg0, %c8_i32_28 : i32
    %c1_i32_29 = arith.constant 1 : i32
    %88 = arith.addi %87, %c1_i32_29 : i32
    %89 = arith.index_cast %88 : i32 to index
    %c1_30 = arith.constant 1 : index
    %90 = memref.load %arg2[%89, %c1_30] : memref<8x8xi32, #tpu.memory_space<smem>>
    %91 = arith.cmpi sge, %90, %0 : i32
    %c256_i32_31 = arith.constant 256 : i32
    %92 = arith.addi %0, %c256_i32_31 : i32
    %93 = arith.cmpi slt, %90, %92 : i32
    %94 = arith.andi %91, %93 : i1
    %c8_i32_32 = arith.constant 8 : i32
    %95 = arith.muli %arg0, %c8_i32_32 : i32
    %c2_i32_33 = arith.constant 2 : i32
    %96 = arith.addi %95, %c2_i32_33 : i32
    %97 = arith.index_cast %96 : i32 to index
    %c1_34 = arith.constant 1 : index
    %98 = memref.load %arg2[%97, %c1_34] : memref<8x8xi32, #tpu.memory_space<smem>>
    %99 = arith.cmpi sge, %98, %0 : i32
    %c256_i32_35 = arith.constant 256 : i32
    %100 = arith.addi %0, %c256_i32_35 : i32
    %101 = arith.cmpi slt, %98, %100 : i32
    %102 = arith.andi %99, %101 : i1
    %c8_i32_36 = arith.constant 8 : i32
    %103 = arith.muli %arg0, %c8_i32_36 : i32
    %c3_i32_37 = arith.constant 3 : i32
    %104 = arith.addi %103, %c3_i32_37 : i32
    %105 = arith.index_cast %104 : i32 to index
    %c1_38 = arith.constant 1 : index
    %106 = memref.load %arg2[%105, %c1_38] : memref<8x8xi32, #tpu.memory_space<smem>>
    %107 = arith.cmpi sge, %106, %0 : i32
    %c256_i32_39 = arith.constant 256 : i32
    %108 = arith.addi %0, %c256_i32_39 : i32
    %109 = arith.cmpi slt, %106, %108 : i32
    %110 = arith.andi %107, %109 : i1
    %c8_i32_40 = arith.constant 8 : i32
    %111 = arith.muli %arg0, %c8_i32_40 : i32
    %c4_i32_41 = arith.constant 4 : i32
    %112 = arith.addi %111, %c4_i32_41 : i32
    %113 = arith.index_cast %112 : i32 to index
    %c1_42 = arith.constant 1 : index
    %114 = memref.load %arg2[%113, %c1_42] : memref<8x8xi32, #tpu.memory_space<smem>>
    %115 = arith.cmpi sge, %114, %0 : i32
    %c256_i32_43 = arith.constant 256 : i32
    %116 = arith.addi %0, %c256_i32_43 : i32
    %117 = arith.cmpi slt, %114, %116 : i32
    %118 = arith.andi %115, %117 : i1
    %c8_i32_44 = arith.constant 8 : i32
    %119 = arith.muli %arg0, %c8_i32_44 : i32
    %c5_i32_45 = arith.constant 5 : i32
    %120 = arith.addi %119, %c5_i32_45 : i32
    %121 = arith.index_cast %120 : i32 to index
    %c1_46 = arith.constant 1 : index
    %122 = memref.load %arg2[%121, %c1_46] : memref<8x8xi32, #tpu.memory_space<smem>>
    %123 = arith.cmpi sge, %122, %0 : i32
    %c256_i32_47 = arith.constant 256 : i32
    %124 = arith.addi %0, %c256_i32_47 : i32
    %125 = arith.cmpi slt, %122, %124 : i32
    %126 = arith.andi %123, %125 : i1
    %c8_i32_48 = arith.constant 8 : i32
    %127 = arith.muli %arg0, %c8_i32_48 : i32
    %c6_i32_49 = arith.constant 6 : i32
    %128 = arith.addi %127, %c6_i32_49 : i32
    %129 = arith.index_cast %128 : i32 to index
    %c1_50 = arith.constant 1 : index
    %130 = memref.load %arg2[%129, %c1_50] : memref<8x8xi32, #tpu.memory_space<smem>>
    %131 = arith.cmpi sge, %130, %0 : i32
    %c256_i32_51 = arith.constant 256 : i32
    %132 = arith.addi %0, %c256_i32_51 : i32
    %133 = arith.cmpi slt, %130, %132 : i32
    %134 = arith.andi %131, %133 : i1
    %c8_i32_52 = arith.constant 8 : i32
    %135 = arith.muli %arg0, %c8_i32_52 : i32
    %c7_i32_53 = arith.constant 7 : i32
    %136 = arith.addi %135, %c7_i32_53 : i32
    %137 = arith.index_cast %136 : i32 to index
    %c1_54 = arith.constant 1 : index
    %138 = memref.load %arg2[%137, %c1_54] : memref<8x8xi32, #tpu.memory_space<smem>>
    %139 = arith.cmpi sge, %138, %0 : i32
    %c256_i32_55 = arith.constant 256 : i32
    %140 = arith.addi %0, %c256_i32_55 : i32
    %141 = arith.cmpi slt, %138, %140 : i32
    %142 = arith.andi %139, %141 : i1
    %143 = arith.ori %86, %94 : i1
    %144 = arith.ori %143, %102 : i1
    %145 = arith.ori %144, %110 : i1
    %146 = arith.ori %145, %118 : i1
    %147 = arith.ori %146, %126 : i1
    %148 = arith.ori %147, %134 : i1
    %149 = arith.ori %148, %142 : i1
    %150 = arith.extui %149 : i1 to i32
    %c0_i32_56 = arith.constant 0 : i32
    %151 = arith.cmpi ne, %150, %c0_i32_56 : i32
    scf.if %151 {
      %c0_251 = arith.constant 0 : index
      %c1_252 = arith.constant 1 : index
      %593 = vector.load %arg3[%c0_251, %c1_252] : memref<8x8xi32, #tpu.memory_space<vmem>>, vector<8x1xi32>
      %c0_253 = arith.constant 0 : index
      %c1_254 = arith.constant 1 : index
      %594 = vector.load %arg4[%c0_253, %c1_254] : memref<8x8xf32, #tpu.memory_space<vmem>>, vector<8x1xf32>
      %595 = vector.broadcast %593 : vector<8x1xi32> to vector<8x256xi32>
      %596 = arith.cmpi eq, %595, %3 : vector<8x256xi32>
      %c0_255 = arith.constant 0 : index
      %c0_256 = arith.constant 0 : index
      %597 = vector.load %arg5[%c0_255, %c0_256] : memref<8x256xf32, #tpu.memory_space<vmem>>, vector<8x256xf32>
      %cst_257 = arith.constant 0.000000e+00 : f32
      %598 = vector.shape_cast %594 : vector<8x1xf32> to vector<8x1xf32>
      %599 = vector.broadcast %598 : vector<8x1xf32> to vector<8x256xf32>
      %600 = vector.broadcast %cst_257 : f32 to vector<8x256xf32>
      %601 = arith.select %596, %599, %600 : vector<8x256xi1>, vector<8x256xf32>
      %602 = arith.maximumf %597, %601 : vector<8x256xf32>
      %c0_258 = arith.constant 0 : index
      %c0_259 = arith.constant 0 : index
      %603 = vector.load %arg5[%c0_258, %c0_259] : memref<8x256xf32, #tpu.memory_space<vmem>>, vector<8x256xf32>
      tpu.vector_store %arg5[%c0_258, %c0_259], %602 {strides = array<i32>} : memref<8x256xf32, #tpu.memory_space<vmem>>, vector<8x256xf32>,
    } else {
    }
    %c8_i32_57 = arith.constant 8 : i32
    %152 = arith.muli %arg0, %c8_i32_57 : i32
    %c0_i32_58 = arith.constant 0 : i32
    %153 = arith.addi %152, %c0_i32_58 : i32
    %154 = arith.index_cast %153 : i32 to index
    %c2 = arith.constant 2 : index
    %155 = memref.load %arg2[%154, %c2] : memref<8x8xi32, #tpu.memory_space<smem>>
    %156 = arith.cmpi sge, %155, %0 : i32
    %c256_i32_59 = arith.constant 256 : i32
    %157 = arith.addi %0, %c256_i32_59 : i32
    %158 = arith.cmpi slt, %155, %157 : i32
    %159 = arith.andi %156, %158 : i1
    %c8_i32_60 = arith.constant 8 : i32
    %160 = arith.muli %arg0, %c8_i32_60 : i32
    %c1_i32_61 = arith.constant 1 : i32
    %161 = arith.addi %160, %c1_i32_61 : i32
    %162 = arith.index_cast %161 : i32 to index
    %c2_62 = arith.constant 2 : index
    %163 = memref.load %arg2[%162, %c2_62] : memref<8x8xi32, #tpu.memory_space<smem>>
    %164 = arith.cmpi sge, %163, %0 : i32
    %c256_i32_63 = arith.constant 256 : i32
    %165 = arith.addi %0, %c256_i32_63 : i32
    %166 = arith.cmpi slt, %163, %165 : i32
    %167 = arith.andi %164, %166 : i1
    %c8_i32_64 = arith.constant 8 : i32
    %168 = arith.muli %arg0, %c8_i32_64 : i32
    %c2_i32_65 = arith.constant 2 : i32
    %169 = arith.addi %168, %c2_i32_65 : i32
    %170 = arith.index_cast %169 : i32 to index
    %c2_66 = arith.constant 2 : index
    %171 = memref.load %arg2[%170, %c2_66] : memref<8x8xi32, #tpu.memory_space<smem>>
    %172 = arith.cmpi sge, %171, %0 : i32
    %c256_i32_67 = arith.constant 256 : i32
    %173 = arith.addi %0, %c256_i32_67 : i32
    %174 = arith.cmpi slt, %171, %173 : i32
    %175 = arith.andi %172, %174 : i1
    %c8_i32_68 = arith.constant 8 : i32
    %176 = arith.muli %arg0, %c8_i32_68 : i32
    %c3_i32_69 = arith.constant 3 : i32
    %177 = arith.addi %176, %c3_i32_69 : i32
    %178 = arith.index_cast %177 : i32 to index
    %c2_70 = arith.constant 2 : index
    %179 = memref.load %arg2[%178, %c2_70] : memref<8x8xi32, #tpu.memory_space<smem>>
    %180 = arith.cmpi sge, %179, %0 : i32
    %c256_i32_71 = arith.constant 256 : i32
    %181 = arith.addi %0, %c256_i32_71 : i32
    %182 = arith.cmpi slt, %179, %181 : i32
    %183 = arith.andi %180, %182 : i1
    %c8_i32_72 = arith.constant 8 : i32
    %184 = arith.muli %arg0, %c8_i32_72 : i32
    %c4_i32_73 = arith.constant 4 : i32
    %185 = arith.addi %184, %c4_i32_73 : i32
    %186 = arith.index_cast %185 : i32 to index
    %c2_74 = arith.constant 2 : index
    %187 = memref.load %arg2[%186, %c2_74] : memref<8x8xi32, #tpu.memory_space<smem>>
    %188 = arith.cmpi sge, %187, %0 : i32
    %c256_i32_75 = arith.constant 256 : i32
    %189 = arith.addi %0, %c256_i32_75 : i32
    %190 = arith.cmpi slt, %187, %189 : i32
    %191 = arith.andi %188, %190 : i1
    %c8_i32_76 = arith.constant 8 : i32
    %192 = arith.muli %arg0, %c8_i32_76 : i32
    %c5_i32_77 = arith.constant 5 : i32
    %193 = arith.addi %192, %c5_i32_77 : i32
    %194 = arith.index_cast %193 : i32 to index
    %c2_78 = arith.constant 2 : index
    %195 = memref.load %arg2[%194, %c2_78] : memref<8x8xi32, #tpu.memory_space<smem>>
    %196 = arith.cmpi sge, %195, %0 : i32
    %c256_i32_79 = arith.constant 256 : i32
    %197 = arith.addi %0, %c256_i32_79 : i32
    %198 = arith.cmpi slt, %195, %197 : i32
    %199 = arith.andi %196, %198 : i1
    %c8_i32_80 = arith.constant 8 : i32
    %200 = arith.muli %arg0, %c8_i32_80 : i32
    %c6_i32_81 = arith.constant 6 : i32
    %201 = arith.addi %200, %c6_i32_81 : i32
    %202 = arith.index_cast %201 : i32 to index
    %c2_82 = arith.constant 2 : index
    %203 = memref.load %arg2[%202, %c2_82] : memref<8x8xi32, #tpu.memory_space<smem>>
    %204 = arith.cmpi sge, %203, %0 : i32
    %c256_i32_83 = arith.constant 256 : i32
    %205 = arith.addi %0, %c256_i32_83 : i32
    %206 = arith.cmpi slt, %203, %205 : i32
    %207 = arith.andi %204, %206 : i1
    %c8_i32_84 = arith.constant 8 : i32
    %208 = arith.muli %arg0, %c8_i32_84 : i32
    %c7_i32_85 = arith.constant 7 : i32
    %209 = arith.addi %208, %c7_i32_85 : i32
    %210 = arith.index_cast %209 : i32 to index
    %c2_86 = arith.constant 2 : index
    %211 = memref.load %arg2[%210, %c2_86] : memref<8x8xi32, #tpu.memory_space<smem>>
    %212 = arith.cmpi sge, %211, %0 : i32
    %c256_i32_87 = arith.constant 256 : i32
    %213 = arith.addi %0, %c256_i32_87 : i32
    %214 = arith.cmpi slt, %211, %213 : i32
    %215 = arith.andi %212, %214 : i1
    %216 = arith.ori %159, %167 : i1
    %217 = arith.ori %216, %175 : i1
    %218 = arith.ori %217, %183 : i1
    %219 = arith.ori %218, %191 : i1
    %220 = arith.ori %219, %199 : i1
    %221 = arith.ori %220, %207 : i1
    %222 = arith.ori %221, %215 : i1
    %223 = arith.extui %222 : i1 to i32
    %c0_i32_88 = arith.constant 0 : i32
    %224 = arith.cmpi ne, %223, %c0_i32_88 : i32
    scf.if %224 {
      %c0_251 = arith.constant 0 : index
      %c2_252 = arith.constant 2 : index
      %593 = vector.load %arg3[%c0_251, %c2_252] : memref<8x8xi32, #tpu.memory_space<vmem>>, vector<8x1xi32>
      %c0_253 = arith.constant 0 : index
      %c2_254 = arith.constant 2 : index
      %594 = vector.load %arg4[%c0_253, %c2_254] : memref<8x8xf32, #tpu.memory_space<vmem>>, vector<8x1xf32>
      %595 = vector.broadcast %593 : vector<8x1xi32> to vector<8x256xi32>
      %596 = arith.cmpi eq, %595, %3 : vector<8x256xi32>
      %c0_255 = arith.constant 0 : index
      %c0_256 = arith.constant 0 : index
      %597 = vector.load %arg5[%c0_255, %c0_256] : memref<8x256xf32, #tpu.memory_space<vmem>>, vector<8x256xf32>
      %cst_257 = arith.constant 0.000000e+00 : f32
      %598 = vector.shape_cast %594 : vector<8x1xf32> to vector<8x1xf32>
      %599 = vector.broadcast %598 : vector<8x1xf32> to vector<8x256xf32>
      %600 = vector.broadcast %cst_257 : f32 to vector<8x256xf32>
      %601 = arith.select %596, %599, %600 : vector<8x256xi1>, vector<8x256xf32>
      %602 = arith.maximumf %597, %601 : vector<8x256xf32>
      %c0_258 = arith.constant 0 : index
      %c0_259 = arith.constant 0 : index
      %603 = vector.load %arg5[%c0_258, %c0_259] : memref<8x256xf32, #tpu.memory_space<vmem>>, vector<8x256xf32>
      tpu.vector_store %arg5[%c0_258, %c0_259], %602 {strides = array<i32>} : memref<8x256xf32, #tpu.memory_space<vmem>>, vector<8x256xf32>,
    } else {
    }
    %c8_i32_89 = arith.constant 8 : i32
    %225 = arith.muli %arg0, %c8_i32_89 : i32
    %c0_i32_90 = arith.constant 0 : i32
    %226 = arith.addi %225, %c0_i32_90 : i32
    %227 = arith.index_cast %226 : i32 to index
    %c3 = arith.constant 3 : index
    %228 = memref.load %arg2[%227, %c3] : memref<8x8xi32, #tpu.memory_space<smem>>
    %229 = arith.cmpi sge, %228, %0 : i32
    %c256_i32_91 = arith.constant 256 : i32
    %230 = arith.addi %0, %c256_i32_91 : i32
    %231 = arith.cmpi slt, %228, %230 : i32
    %232 = arith.andi %229, %231 : i1
    %c8_i32_92 = arith.constant 8 : i32
    %233 = arith.muli %arg0, %c8_i32_92 : i32
    %c1_i32_93 = arith.constant 1 : i32
    %234 = arith.addi %233, %c1_i32_93 : i32
    %235 = arith.index_cast %234 : i32 to index
    %c3_94 = arith.constant 3 : index
    %236 = memref.load %arg2[%235, %c3_94] : memref<8x8xi32, #tpu.memory_space<smem>>
    %237 = arith.cmpi sge, %236, %0 : i32
    %c256_i32_95 = arith.constant 256 : i32
    %238 = arith.addi %0, %c256_i32_95 : i32
    %239 = arith.cmpi slt, %236, %238 : i32
    %240 = arith.andi %237, %239 : i1
    %c8_i32_96 = arith.constant 8 : i32
    %241 = arith.muli %arg0, %c8_i32_96 : i32
    %c2_i32_97 = arith.constant 2 : i32
    %242 = arith.addi %241, %c2_i32_97 : i32
    %243 = arith.index_cast %242 : i32 to index
    %c3_98 = arith.constant 3 : index
    %244 = memref.load %arg2[%243, %c3_98] : memref<8x8xi32, #tpu.memory_space<smem>>
    %245 = arith.cmpi sge, %244, %0 : i32
    %c256_i32_99 = arith.constant 256 : i32
    %246 = arith.addi %0, %c256_i32_99 : i32
    %247 = arith.cmpi slt, %244, %246 : i32
    %248 = arith.andi %245, %247 : i1
    %c8_i32_100 = arith.constant 8 : i32
    %249 = arith.muli %arg0, %c8_i32_100 : i32
    %c3_i32_101 = arith.constant 3 : i32
    %250 = arith.addi %249, %c3_i32_101 : i32
    %251 = arith.index_cast %250 : i32 to index
    %c3_102 = arith.constant 3 : index
    %252 = memref.load %arg2[%251, %c3_102] : memref<8x8xi32, #tpu.memory_space<smem>>
    %253 = arith.cmpi sge, %252, %0 : i32
    %c256_i32_103 = arith.constant 256 : i32
    %254 = arith.addi %0, %c256_i32_103 : i32
    %255 = arith.cmpi slt, %252, %254 : i32
    %256 = arith.andi %253, %255 : i1
    %c8_i32_104 = arith.constant 8 : i32
    %257 = arith.muli %arg0, %c8_i32_104 : i32
    %c4_i32_105 = arith.constant 4 : i32
    %258 = arith.addi %257, %c4_i32_105 : i32
    %259 = arith.index_cast %258 : i32 to index
    %c3_106 = arith.constant 3 : index
    %260 = memref.load %arg2[%259, %c3_106] : memref<8x8xi32, #tpu.memory_space<smem>>
    %261 = arith.cmpi sge, %260, %0 : i32
    %c256_i32_107 = arith.constant 256 : i32
    %262 = arith.addi %0, %c256_i32_107 : i32
    %263 = arith.cmpi slt, %260, %262 : i32
    %264 = arith.andi %261, %263 : i1
    %c8_i32_108 = arith.constant 8 : i32
    %265 = arith.muli %arg0, %c8_i32_108 : i32
    %c5_i32_109 = arith.constant 5 : i32
    %266 = arith.addi %265, %c5_i32_109 : i32
    %267 = arith.index_cast %266 : i32 to index
    %c3_110 = arith.constant 3 : index
    %268 = memref.load %arg2[%267, %c3_110] : memref<8x8xi32, #tpu.memory_space<smem>>
    %269 = arith.cmpi sge, %268, %0 : i32
    %c256_i32_111 = arith.constant 256 : i32
    %270 = arith.addi %0, %c256_i32_111 : i32
    %271 = arith.cmpi slt, %268, %270 : i32
    %272 = arith.andi %269, %271 : i1
    %c8_i32_112 = arith.constant 8 : i32
    %273 = arith.muli %arg0, %c8_i32_112 : i32
    %c6_i32_113 = arith.constant 6 : i32
    %274 = arith.addi %273, %c6_i32_113 : i32
    %275 = arith.index_cast %274 : i32 to index
    %c3_114 = arith.constant 3 : index
    %276 = memref.load %arg2[%275, %c3_114] : memref<8x8xi32, #tpu.memory_space<smem>>
    %277 = arith.cmpi sge, %276, %0 : i32
    %c256_i32_115 = arith.constant 256 : i32
    %278 = arith.addi %0, %c256_i32_115 : i32
    %279 = arith.cmpi slt, %276, %278 : i32
    %280 = arith.andi %277, %279 : i1
    %c8_i32_116 = arith.constant 8 : i32
    %281 = arith.muli %arg0, %c8_i32_116 : i32
    %c7_i32_117 = arith.constant 7 : i32
    %282 = arith.addi %281, %c7_i32_117 : i32
    %283 = arith.index_cast %282 : i32 to index
    %c3_118 = arith.constant 3 : index
    %284 = memref.load %arg2[%283, %c3_118] : memref<8x8xi32, #tpu.memory_space<smem>>
    %285 = arith.cmpi sge, %284, %0 : i32
    %c256_i32_119 = arith.constant 256 : i32
    %286 = arith.addi %0, %c256_i32_119 : i32
    %287 = arith.cmpi slt, %284, %286 : i32
    %288 = arith.andi %285, %287 : i1
    %289 = arith.ori %232, %240 : i1
    %290 = arith.ori %289, %248 : i1
    %291 = arith.ori %290, %256 : i1
    %292 = arith.ori %291, %264 : i1
    %293 = arith.ori %292, %272 : i1
    %294 = arith.ori %293, %280 : i1
    %295 = arith.ori %294, %288 : i1
    %296 = arith.extui %295 : i1 to i32
    %c0_i32_120 = arith.constant 0 : i32
    %297 = arith.cmpi ne, %296, %c0_i32_120 : i32
    scf.if %297 {
      %c0_251 = arith.constant 0 : index
      %c3_252 = arith.constant 3 : index
      %593 = vector.load %arg3[%c0_251, %c3_252] : memref<8x8xi32, #tpu.memory_space<vmem>>, vector<8x1xi32>
      %c0_253 = arith.constant 0 : index
      %c3_254 = arith.constant 3 : index
      %594 = vector.load %arg4[%c0_253, %c3_254] : memref<8x8xf32, #tpu.memory_space<vmem>>, vector<8x1xf32>
      %595 = vector.broadcast %593 : vector<8x1xi32> to vector<8x256xi32>
      %596 = arith.cmpi eq, %595, %3 : vector<8x256xi32>
      %c0_255 = arith.constant 0 : index
      %c0_256 = arith.constant 0 : index
      %597 = vector.load %arg5[%c0_255, %c0_256] : memref<8x256xf32, #tpu.memory_space<vmem>>, vector<8x256xf32>
      %cst_257 = arith.constant 0.000000e+00 : f32
      %598 = vector.shape_cast %594 : vector<8x1xf32> to vector<8x1xf32>
      %599 = vector.broadcast %598 : vector<8x1xf32> to vector<8x256xf32>
      %600 = vector.broadcast %cst_257 : f32 to vector<8x256xf32>
      %601 = arith.select %596, %599, %600 : vector<8x256xi1>, vector<8x256xf32>
      %602 = arith.maximumf %597, %601 : vector<8x256xf32>
      %c0_258 = arith.constant 0 : index
      %c0_259 = arith.constant 0 : index
      %603 = vector.load %arg5[%c0_258, %c0_259] : memref<8x256xf32, #tpu.memory_space<vmem>>, vector<8x256xf32>
      tpu.vector_store %arg5[%c0_258, %c0_259], %602 {strides = array<i32>} : memref<8x256xf32, #tpu.memory_space<vmem>>, vector<8x256xf32>,
    } else {
    }
    %c8_i32_121 = arith.constant 8 : i32
    %298 = arith.muli %arg0, %c8_i32_121 : i32
    %c0_i32_122 = arith.constant 0 : i32
    %299 = arith.addi %298, %c0_i32_122 : i32
    %300 = arith.index_cast %299 : i32 to index
    %c4 = arith.constant 4 : index
    %301 = memref.load %arg2[%300, %c4] : memref<8x8xi32, #tpu.memory_space<smem>>
    %302 = arith.cmpi sge, %301, %0 : i32
    %c256_i32_123 = arith.constant 256 : i32
    %303 = arith.addi %0, %c256_i32_123 : i32
    %304 = arith.cmpi slt, %301, %303 : i32
    %305 = arith.andi %302, %304 : i1
    %c8_i32_124 = arith.constant 8 : i32
    %306 = arith.muli %arg0, %c8_i32_124 : i32
    %c1_i32_125 = arith.constant 1 : i32
    %307 = arith.addi %306, %c1_i32_125 : i32
    %308 = arith.index_cast %307 : i32 to index
    %c4_126 = arith.constant 4 : index
    %309 = memref.load %arg2[%308, %c4_126] : memref<8x8xi32, #tpu.memory_space<smem>>
    %310 = arith.cmpi sge, %309, %0 : i32
    %c256_i32_127 = arith.constant 256 : i32
    %311 = arith.addi %0, %c256_i32_127 : i32
    %312 = arith.cmpi slt, %309, %311 : i32
    %313 = arith.andi %310, %312 : i1
    %c8_i32_128 = arith.constant 8 : i32
    %314 = arith.muli %arg0, %c8_i32_128 : i32
    %c2_i32_129 = arith.constant 2 : i32
    %315 = arith.addi %314, %c2_i32_129 : i32
    %316 = arith.index_cast %315 : i32 to index
    %c4_130 = arith.constant 4 : index
    %317 = memref.load %arg2[%316, %c4_130] : memref<8x8xi32, #tpu.memory_space<smem>>
    %318 = arith.cmpi sge, %317, %0 : i32
    %c256_i32_131 = arith.constant 256 : i32
    %319 = arith.addi %0, %c256_i32_131 : i32
    %320 = arith.cmpi slt, %317, %319 : i32
    %321 = arith.andi %318, %320 : i1
    %c8_i32_132 = arith.constant 8 : i32
    %322 = arith.muli %arg0, %c8_i32_132 : i32
    %c3_i32_133 = arith.constant 3 : i32
    %323 = arith.addi %322, %c3_i32_133 : i32
    %324 = arith.index_cast %323 : i32 to index
    %c4_134 = arith.constant 4 : index
    %325 = memref.load %arg2[%324, %c4_134] : memref<8x8xi32, #tpu.memory_space<smem>>
    %326 = arith.cmpi sge, %325, %0 : i32
    %c256_i32_135 = arith.constant 256 : i32
    %327 = arith.addi %0, %c256_i32_135 : i32
    %328 = arith.cmpi slt, %325, %327 : i32
    %329 = arith.andi %326, %328 : i1
    %c8_i32_136 = arith.constant 8 : i32
    %330 = arith.muli %arg0, %c8_i32_136 : i32
    %c4_i32_137 = arith.constant 4 : i32
    %331 = arith.addi %330, %c4_i32_137 : i32
    %332 = arith.index_cast %331 : i32 to index
    %c4_138 = arith.constant 4 : index
    %333 = memref.load %arg2[%332, %c4_138] : memref<8x8xi32, #tpu.memory_space<smem>>
    %334 = arith.cmpi sge, %333, %0 : i32
    %c256_i32_139 = arith.constant 256 : i32
    %335 = arith.addi %0, %c256_i32_139 : i32
    %336 = arith.cmpi slt, %333, %335 : i32
    %337 = arith.andi %334, %336 : i1
    %c8_i32_140 = arith.constant 8 : i32
    %338 = arith.muli %arg0, %c8_i32_140 : i32
    %c5_i32_141 = arith.constant 5 : i32
    %339 = arith.addi %338, %c5_i32_141 : i32
    %340 = arith.index_cast %339 : i32 to index
    %c4_142 = arith.constant 4 : index
    %341 = memref.load %arg2[%340, %c4_142] : memref<8x8xi32, #tpu.memory_space<smem>>
    %342 = arith.cmpi sge, %341, %0 : i32
    %c256_i32_143 = arith.constant 256 : i32
    %343 = arith.addi %0, %c256_i32_143 : i32
    %344 = arith.cmpi slt, %341, %343 : i32
    %345 = arith.andi %342, %344 : i1
    %c8_i32_144 = arith.constant 8 : i32
    %346 = arith.muli %arg0, %c8_i32_144 : i32
    %c6_i32_145 = arith.constant 6 : i32
    %347 = arith.addi %346, %c6_i32_145 : i32
    %348 = arith.index_cast %347 : i32 to index
    %c4_146 = arith.constant 4 : index
    %349 = memref.load %arg2[%348, %c4_146] : memref<8x8xi32, #tpu.memory_space<smem>>
    %350 = arith.cmpi sge, %349, %0 : i32
    %c256_i32_147 = arith.constant 256 : i32
    %351 = arith.addi %0, %c256_i32_147 : i32
    %352 = arith.cmpi slt, %349, %351 : i32
    %353 = arith.andi %350, %352 : i1
    %c8_i32_148 = arith.constant 8 : i32
    %354 = arith.muli %arg0, %c8_i32_148 : i32
    %c7_i32_149 = arith.constant 7 : i32
    %355 = arith.addi %354, %c7_i32_149 : i32
    %356 = arith.index_cast %355 : i32 to index
    %c4_150 = arith.constant 4 : index
    %357 = memref.load %arg2[%356, %c4_150] : memref<8x8xi32, #tpu.memory_space<smem>>
    %358 = arith.cmpi sge, %357, %0 : i32
    %c256_i32_151 = arith.constant 256 : i32
    %359 = arith.addi %0, %c256_i32_151 : i32
    %360 = arith.cmpi slt, %357, %359 : i32
    %361 = arith.andi %358, %360 : i1
    %362 = arith.ori %305, %313 : i1
    %363 = arith.ori %362, %321 : i1
    %364 = arith.ori %363, %329 : i1
    %365 = arith.ori %364, %337 : i1
    %366 = arith.ori %365, %345 : i1
    %367 = arith.ori %366, %353 : i1
    %368 = arith.ori %367, %361 : i1
    %369 = arith.extui %368 : i1 to i32
    %c0_i32_152 = arith.constant 0 : i32
    %370 = arith.cmpi ne, %369, %c0_i32_152 : i32
    scf.if %370 {
      %c0_251 = arith.constant 0 : index
      %c4_252 = arith.constant 4 : index
      %593 = vector.load %arg3[%c0_251, %c4_252] : memref<8x8xi32, #tpu.memory_space<vmem>>, vector<8x1xi32>
      %c0_253 = arith.constant 0 : index
      %c4_254 = arith.constant 4 : index
      %594 = vector.load %arg4[%c0_253, %c4_254] : memref<8x8xf32, #tpu.memory_space<vmem>>, vector<8x1xf32>
      %595 = vector.broadcast %593 : vector<8x1xi32> to vector<8x256xi32>
      %596 = arith.cmpi eq, %595, %3 : vector<8x256xi32>
      %c0_255 = arith.constant 0 : index
      %c0_256 = arith.constant 0 : index
      %597 = vector.load %arg5[%c0_255, %c0_256] : memref<8x256xf32, #tpu.memory_space<vmem>>, vector<8x256xf32>
      %cst_257 = arith.constant 0.000000e+00 : f32
      %598 = vector.shape_cast %594 : vector<8x1xf32> to vector<8x1xf32>
      %599 = vector.broadcast %598 : vector<8x1xf32> to vector<8x256xf32>
      %600 = vector.broadcast %cst_257 : f32 to vector<8x256xf32>
      %601 = arith.select %596, %599, %600 : vector<8x256xi1>, vector<8x256xf32>
      %602 = arith.maximumf %597, %601 : vector<8x256xf32>
      %c0_258 = arith.constant 0 : index
      %c0_259 = arith.constant 0 : index
      %603 = vector.load %arg5[%c0_258, %c0_259] : memref<8x256xf32, #tpu.memory_space<vmem>>, vector<8x256xf32>
      tpu.vector_store %arg5[%c0_258, %c0_259], %602 {strides = array<i32>} : memref<8x256xf32, #tpu.memory_space<vmem>>, vector<8x256xf32>,
    } else {
    }
    %c8_i32_153 = arith.constant 8 : i32
    %371 = arith.muli %arg0, %c8_i32_153 : i32
    %c0_i32_154 = arith.constant 0 : i32
    %372 = arith.addi %371, %c0_i32_154 : i32
    %373 = arith.index_cast %372 : i32 to index
    %c5 = arith.constant 5 : index
    %374 = memref.load %arg2[%373, %c5] : memref<8x8xi32, #tpu.memory_space<smem>>
    %375 = arith.cmpi sge, %374, %0 : i32
    %c256_i32_155 = arith.constant 256 : i32
    %376 = arith.addi %0, %c256_i32_155 : i32
    %377 = arith.cmpi slt, %374, %376 : i32
    %378 = arith.andi %375, %377 : i1
    %c8_i32_156 = arith.constant 8 : i32
    %379 = arith.muli %arg0, %c8_i32_156 : i32
    %c1_i32_157 = arith.constant 1 : i32
    %380 = arith.addi %379, %c1_i32_157 : i32
    %381 = arith.index_cast %380 : i32 to index
    %c5_158 = arith.constant 5 : index
    %382 = memref.load %arg2[%381, %c5_158] : memref<8x8xi32, #tpu.memory_space<smem>>
    %383 = arith.cmpi sge, %382, %0 : i32
    %c256_i32_159 = arith.constant 256 : i32
    %384 = arith.addi %0, %c256_i32_159 : i32
    %385 = arith.cmpi slt, %382, %384 : i32
    %386 = arith.andi %383, %385 : i1
    %c8_i32_160 = arith.constant 8 : i32
    %387 = arith.muli %arg0, %c8_i32_160 : i32
    %c2_i32_161 = arith.constant 2 : i32
    %388 = arith.addi %387, %c2_i32_161 : i32
    %389 = arith.index_cast %388 : i32 to index
    %c5_162 = arith.constant 5 : index
    %390 = memref.load %arg2[%389, %c5_162] : memref<8x8xi32, #tpu.memory_space<smem>>
    %391 = arith.cmpi sge, %390, %0 : i32
    %c256_i32_163 = arith.constant 256 : i32
    %392 = arith.addi %0, %c256_i32_163 : i32
    %393 = arith.cmpi slt, %390, %392 : i32
    %394 = arith.andi %391, %393 : i1
    %c8_i32_164 = arith.constant 8 : i32
    %395 = arith.muli %arg0, %c8_i32_164 : i32
    %c3_i32_165 = arith.constant 3 : i32
    %396 = arith.addi %395, %c3_i32_165 : i32
    %397 = arith.index_cast %396 : i32 to index
    %c5_166 = arith.constant 5 : index
    %398 = memref.load %arg2[%397, %c5_166] : memref<8x8xi32, #tpu.memory_space<smem>>
    %399 = arith.cmpi sge, %398, %0 : i32
    %c256_i32_167 = arith.constant 256 : i32
    %400 = arith.addi %0, %c256_i32_167 : i32
    %401 = arith.cmpi slt, %398, %400 : i32
    %402 = arith.andi %399, %401 : i1
    %c8_i32_168 = arith.constant 8 : i32
    %403 = arith.muli %arg0, %c8_i32_168 : i32
    %c4_i32_169 = arith.constant 4 : i32
    %404 = arith.addi %403, %c4_i32_169 : i32
    %405 = arith.index_cast %404 : i32 to index
    %c5_170 = arith.constant 5 : index
    %406 = memref.load %arg2[%405, %c5_170] : memref<8x8xi32, #tpu.memory_space<smem>>
    %407 = arith.cmpi sge, %406, %0 : i32
    %c256_i32_171 = arith.constant 256 : i32
    %408 = arith.addi %0, %c256_i32_171 : i32
    %409 = arith.cmpi slt, %406, %408 : i32
    %410 = arith.andi %407, %409 : i1
    %c8_i32_172 = arith.constant 8 : i32
    %411 = arith.muli %arg0, %c8_i32_172 : i32
    %c5_i32_173 = arith.constant 5 : i32
    %412 = arith.addi %411, %c5_i32_173 : i32
    %413 = arith.index_cast %412 : i32 to index
    %c5_174 = arith.constant 5 : index
    %414 = memref.load %arg2[%413, %c5_174] : memref<8x8xi32, #tpu.memory_space<smem>>
    %415 = arith.cmpi sge, %414, %0 : i32
    %c256_i32_175 = arith.constant 256 : i32
    %416 = arith.addi %0, %c256_i32_175 : i32
    %417 = arith.cmpi slt, %414, %416 : i32
    %418 = arith.andi %415, %417 : i1
    %c8_i32_176 = arith.constant 8 : i32
    %419 = arith.muli %arg0, %c8_i32_176 : i32
    %c6_i32_177 = arith.constant 6 : i32
    %420 = arith.addi %419, %c6_i32_177 : i32
    %421 = arith.index_cast %420 : i32 to index
    %c5_178 = arith.constant 5 : index
    %422 = memref.load %arg2[%421, %c5_178] : memref<8x8xi32, #tpu.memory_space<smem>>
    %423 = arith.cmpi sge, %422, %0 : i32
    %c256_i32_179 = arith.constant 256 : i32
    %424 = arith.addi %0, %c256_i32_179 : i32
    %425 = arith.cmpi slt, %422, %424 : i32
    %426 = arith.andi %423, %425 : i1
    %c8_i32_180 = arith.constant 8 : i32
    %427 = arith.muli %arg0, %c8_i32_180 : i32
    %c7_i32_181 = arith.constant 7 : i32
    %428 = arith.addi %427, %c7_i32_181 : i32
    %429 = arith.index_cast %428 : i32 to index
    %c5_182 = arith.constant 5 : index
    %430 = memref.load %arg2[%429, %c5_182] : memref<8x8xi32, #tpu.memory_space<smem>>
    %431 = arith.cmpi sge, %430, %0 : i32
    %c256_i32_183 = arith.constant 256 : i32
    %432 = arith.addi %0, %c256_i32_183 : i32
    %433 = arith.cmpi slt, %430, %432 : i32
    %434 = arith.andi %431, %433 : i1
    %435 = arith.ori %378, %386 : i1
    %436 = arith.ori %435, %394 : i1
    %437 = arith.ori %436, %402 : i1
    %438 = arith.ori %437, %410 : i1
    %439 = arith.ori %438, %418 : i1
    %440 = arith.ori %439, %426 : i1
    %441 = arith.ori %440, %434 : i1
    %442 = arith.extui %441 : i1 to i32
    %c0_i32_184 = arith.constant 0 : i32
    %443 = arith.cmpi ne, %442, %c0_i32_184 : i32
    scf.if %443 {
      %c0_251 = arith.constant 0 : index
      %c5_252 = arith.constant 5 : index
      %593 = vector.load %arg3[%c0_251, %c5_252] : memref<8x8xi32, #tpu.memory_space<vmem>>, vector<8x1xi32>
      %c0_253 = arith.constant 0 : index
      %c5_254 = arith.constant 5 : index
      %594 = vector.load %arg4[%c0_253, %c5_254] : memref<8x8xf32, #tpu.memory_space<vmem>>, vector<8x1xf32>
      %595 = vector.broadcast %593 : vector<8x1xi32> to vector<8x256xi32>
      %596 = arith.cmpi eq, %595, %3 : vector<8x256xi32>
      %c0_255 = arith.constant 0 : index
      %c0_256 = arith.constant 0 : index
      %597 = vector.load %arg5[%c0_255, %c0_256] : memref<8x256xf32, #tpu.memory_space<vmem>>, vector<8x256xf32>
      %cst_257 = arith.constant 0.000000e+00 : f32
      %598 = vector.shape_cast %594 : vector<8x1xf32> to vector<8x1xf32>
      %599 = vector.broadcast %598 : vector<8x1xf32> to vector<8x256xf32>
      %600 = vector.broadcast %cst_257 : f32 to vector<8x256xf32>
      %601 = arith.select %596, %599, %600 : vector<8x256xi1>, vector<8x256xf32>
      %602 = arith.maximumf %597, %601 : vector<8x256xf32>
      %c0_258 = arith.constant 0 : index
      %c0_259 = arith.constant 0 : index
      %603 = vector.load %arg5[%c0_258, %c0_259] : memref<8x256xf32, #tpu.memory_space<vmem>>, vector<8x256xf32>
      tpu.vector_store %arg5[%c0_258, %c0_259], %602 {strides = array<i32>} : memref<8x256xf32, #tpu.memory_space<vmem>>, vector<8x256xf32>,
    } else {
    }
    %c8_i32_185 = arith.constant 8 : i32
    %444 = arith.muli %arg0, %c8_i32_185 : i32
    %c0_i32_186 = arith.constant 0 : i32
    %445 = arith.addi %444, %c0_i32_186 : i32
    %446 = arith.index_cast %445 : i32 to index
    %c6 = arith.constant 6 : index
    %447 = memref.load %arg2[%446, %c6] : memref<8x8xi32, #tpu.memory_space<smem>>
    %448 = arith.cmpi sge, %447, %0 : i32
    %c256_i32_187 = arith.constant 256 : i32
    %449 = arith.addi %0, %c256_i32_187 : i32
    %450 = arith.cmpi slt, %447, %449 : i32
    %451 = arith.andi %448, %450 : i1
    %c8_i32_188 = arith.constant 8 : i32
    %452 = arith.muli %arg0, %c8_i32_188 : i32
    %c1_i32_189 = arith.constant 1 : i32
    %453 = arith.addi %452, %c1_i32_189 : i32
    %454 = arith.index_cast %453 : i32 to index
    %c6_190 = arith.constant 6 : index
    %455 = memref.load %arg2[%454, %c6_190] : memref<8x8xi32, #tpu.memory_space<smem>>
    %456 = arith.cmpi sge, %455, %0 : i32
    %c256_i32_191 = arith.constant 256 : i32
    %457 = arith.addi %0, %c256_i32_191 : i32
    %458 = arith.cmpi slt, %455, %457 : i32
    %459 = arith.andi %456, %458 : i1
    %c8_i32_192 = arith.constant 8 : i32
    %460 = arith.muli %arg0, %c8_i32_192 : i32
    %c2_i32_193 = arith.constant 2 : i32
    %461 = arith.addi %460, %c2_i32_193 : i32
    %462 = arith.index_cast %461 : i32 to index
    %c6_194 = arith.constant 6 : index
    %463 = memref.load %arg2[%462, %c6_194] : memref<8x8xi32, #tpu.memory_space<smem>>
    %464 = arith.cmpi sge, %463, %0 : i32
    %c256_i32_195 = arith.constant 256 : i32
    %465 = arith.addi %0, %c256_i32_195 : i32
    %466 = arith.cmpi slt, %463, %465 : i32
    %467 = arith.andi %464, %466 : i1
    %c8_i32_196 = arith.constant 8 : i32
    %468 = arith.muli %arg0, %c8_i32_196 : i32
    %c3_i32_197 = arith.constant 3 : i32
    %469 = arith.addi %468, %c3_i32_197 : i32
    %470 = arith.index_cast %469 : i32 to index
    %c6_198 = arith.constant 6 : index
    %471 = memref.load %arg2[%470, %c6_198] : memref<8x8xi32, #tpu.memory_space<smem>>
    %472 = arith.cmpi sge, %471, %0 : i32
    %c256_i32_199 = arith.constant 256 : i32
    %473 = arith.addi %0, %c256_i32_199 : i32
    %474 = arith.cmpi slt, %471, %473 : i32
    %475 = arith.andi %472, %474 : i1
    %c8_i32_200 = arith.constant 8 : i32
    %476 = arith.muli %arg0, %c8_i32_200 : i32
    %c4_i32_201 = arith.constant 4 : i32
    %477 = arith.addi %476, %c4_i32_201 : i32
    %478 = arith.index_cast %477 : i32 to index
    %c6_202 = arith.constant 6 : index
    %479 = memref.load %arg2[%478, %c6_202] : memref<8x8xi32, #tpu.memory_space<smem>>
    %480 = arith.cmpi sge, %479, %0 : i32
    %c256_i32_203 = arith.constant 256 : i32
    %481 = arith.addi %0, %c256_i32_203 : i32
    %482 = arith.cmpi slt, %479, %481 : i32
    %483 = arith.andi %480, %482 : i1
    %c8_i32_204 = arith.constant 8 : i32
    %484 = arith.muli %arg0, %c8_i32_204 : i32
    %c5_i32_205 = arith.constant 5 : i32
    %485 = arith.addi %484, %c5_i32_205 : i32
    %486 = arith.index_cast %485 : i32 to index
    %c6_206 = arith.constant 6 : index
    %487 = memref.load %arg2[%486, %c6_206] : memref<8x8xi32, #tpu.memory_space<smem>>
    %488 = arith.cmpi sge, %487, %0 : i32
    %c256_i32_207 = arith.constant 256 : i32
    %489 = arith.addi %0, %c256_i32_207 : i32
    %490 = arith.cmpi slt, %487, %489 : i32
    %491 = arith.andi %488, %490 : i1
    %c8_i32_208 = arith.constant 8 : i32
    %492 = arith.muli %arg0, %c8_i32_208 : i32
    %c6_i32_209 = arith.constant 6 : i32
    %493 = arith.addi %492, %c6_i32_209 : i32
    %494 = arith.index_cast %493 : i32 to index
    %c6_210 = arith.constant 6 : index
    %495 = memref.load %arg2[%494, %c6_210] : memref<8x8xi32, #tpu.memory_space<smem>>
    %496 = arith.cmpi sge, %495, %0 : i32
    %c256_i32_211 = arith.constant 256 : i32
    %497 = arith.addi %0, %c256_i32_211 : i32
    %498 = arith.cmpi slt, %495, %497 : i32
    %499 = arith.andi %496, %498 : i1
    %c8_i32_212 = arith.constant 8 : i32
    %500 = arith.muli %arg0, %c8_i32_212 : i32
    %c7_i32_213 = arith.constant 7 : i32
    %501 = arith.addi %500, %c7_i32_213 : i32
    %502 = arith.index_cast %501 : i32 to index
    %c6_214 = arith.constant 6 : index
    %503 = memref.load %arg2[%502, %c6_214] : memref<8x8xi32, #tpu.memory_space<smem>>
    %504 = arith.cmpi sge, %503, %0 : i32
    %c256_i32_215 = arith.constant 256 : i32
    %505 = arith.addi %0, %c256_i32_215 : i32
    %506 = arith.cmpi slt, %503, %505 : i32
    %507 = arith.andi %504, %506 : i1
    %508 = arith.ori %451, %459 : i1
    %509 = arith.ori %508, %467 : i1
    %510 = arith.ori %509, %475 : i1
    %511 = arith.ori %510, %483 : i1
    %512 = arith.ori %511, %491 : i1
    %513 = arith.ori %512, %499 : i1
    %514 = arith.ori %513, %507 : i1
    %515 = arith.extui %514 : i1 to i32
    %c0_i32_216 = arith.constant 0 : i32
    %516 = arith.cmpi ne, %515, %c0_i32_216 : i32
    scf.if %516 {
      %c0_251 = arith.constant 0 : index
      %c6_252 = arith.constant 6 : index
      %593 = vector.load %arg3[%c0_251, %c6_252] : memref<8x8xi32, #tpu.memory_space<vmem>>, vector<8x1xi32>
      %c0_253 = arith.constant 0 : index
      %c6_254 = arith.constant 6 : index
      %594 = vector.load %arg4[%c0_253, %c6_254] : memref<8x8xf32, #tpu.memory_space<vmem>>, vector<8x1xf32>
      %595 = vector.broadcast %593 : vector<8x1xi32> to vector<8x256xi32>
      %596 = arith.cmpi eq, %595, %3 : vector<8x256xi32>
      %c0_255 = arith.constant 0 : index
      %c0_256 = arith.constant 0 : index
      %597 = vector.load %arg5[%c0_255, %c0_256] : memref<8x256xf32, #tpu.memory_space<vmem>>, vector<8x256xf32>
      %cst_257 = arith.constant 0.000000e+00 : f32
      %598 = vector.shape_cast %594 : vector<8x1xf32> to vector<8x1xf32>
      %599 = vector.broadcast %598 : vector<8x1xf32> to vector<8x256xf32>
      %600 = vector.broadcast %cst_257 : f32 to vector<8x256xf32>
      %601 = arith.select %596, %599, %600 : vector<8x256xi1>, vector<8x256xf32>
      %602 = arith.maximumf %597, %601 : vector<8x256xf32>
      %c0_258 = arith.constant 0 : index
      %c0_259 = arith.constant 0 : index
      %603 = vector.load %arg5[%c0_258, %c0_259] : memref<8x256xf32, #tpu.memory_space<vmem>>, vector<8x256xf32>
      tpu.vector_store %arg5[%c0_258, %c0_259], %602 {strides = array<i32>} : memref<8x256xf32, #tpu.memory_space<vmem>>, vector<8x256xf32>,
    } else {
    }
    %c8_i32_217 = arith.constant 8 : i32
    %517 = arith.muli %arg0, %c8_i32_217 : i32
    %c0_i32_218 = arith.constant 0 : i32
    %518 = arith.addi %517, %c0_i32_218 : i32
    %519 = arith.index_cast %518 : i32 to index
    %c7 = arith.constant 7 : index
    %520 = memref.load %arg2[%519, %c7] : memref<8x8xi32, #tpu.memory_space<smem>>
    %521 = arith.cmpi sge, %520, %0 : i32
    %c256_i32_219 = arith.constant 256 : i32
    %522 = arith.addi %0, %c256_i32_219 : i32
    %523 = arith.cmpi slt, %520, %522 : i32
    %524 = arith.andi %521, %523 : i1
    %c8_i32_220 = arith.constant 8 : i32
    %525 = arith.muli %arg0, %c8_i32_220 : i32
    %c1_i32_221 = arith.constant 1 : i32
    %526 = arith.addi %525, %c1_i32_221 : i32
    %527 = arith.index_cast %526 : i32 to index
    %c7_222 = arith.constant 7 : index
    %528 = memref.load %arg2[%527, %c7_222] : memref<8x8xi32, #tpu.memory_space<smem>>
    %529 = arith.cmpi sge, %528, %0 : i32
    %c256_i32_223 = arith.constant 256 : i32
    %530 = arith.addi %0, %c256_i32_223 : i32
    %531 = arith.cmpi slt, %528, %530 : i32
    %532 = arith.andi %529, %531 : i1
    %c8_i32_224 = arith.constant 8 : i32
    %533 = arith.muli %arg0, %c8_i32_224 : i32
    %c2_i32_225 = arith.constant 2 : i32
    %534 = arith.addi %533, %c2_i32_225 : i32
    %535 = arith.index_cast %534 : i32 to index
    %c7_226 = arith.constant 7 : index
    %536 = memref.load %arg2[%535, %c7_226] : memref<8x8xi32, #tpu.memory_space<smem>>
    %537 = arith.cmpi sge, %536, %0 : i32
    %c256_i32_227 = arith.constant 256 : i32
    %538 = arith.addi %0, %c256_i32_227 : i32
    %539 = arith.cmpi slt, %536, %538 : i32
    %540 = arith.andi %537, %539 : i1
    %c8_i32_228 = arith.constant 8 : i32
    %541 = arith.muli %arg0, %c8_i32_228 : i32
    %c3_i32_229 = arith.constant 3 : i32
    %542 = arith.addi %541, %c3_i32_229 : i32
    %543 = arith.index_cast %542 : i32 to index
    %c7_230 = arith.constant 7 : index
    %544 = memref.load %arg2[%543, %c7_230] : memref<8x8xi32, #tpu.memory_space<smem>>
    %545 = arith.cmpi sge, %544, %0 : i32
    %c256_i32_231 = arith.constant 256 : i32
    %546 = arith.addi %0, %c256_i32_231 : i32
    %547 = arith.cmpi slt, %544, %546 : i32
    %548 = arith.andi %545, %547 : i1
    %c8_i32_232 = arith.constant 8 : i32
    %549 = arith.muli %arg0, %c8_i32_232 : i32
    %c4_i32_233 = arith.constant 4 : i32
    %550 = arith.addi %549, %c4_i32_233 : i32
    %551 = arith.index_cast %550 : i32 to index
    %c7_234 = arith.constant 7 : index
    %552 = memref.load %arg2[%551, %c7_234] : memref<8x8xi32, #tpu.memory_space<smem>>
    %553 = arith.cmpi sge, %552, %0 : i32
    %c256_i32_235 = arith.constant 256 : i32
    %554 = arith.addi %0, %c256_i32_235 : i32
    %555 = arith.cmpi slt, %552, %554 : i32
    %556 = arith.andi %553, %555 : i1
    %c8_i32_236 = arith.constant 8 : i32
    %557 = arith.muli %arg0, %c8_i32_236 : i32
    %c5_i32_237 = arith.constant 5 : i32
    %558 = arith.addi %557, %c5_i32_237 : i32
    %559 = arith.index_cast %558 : i32 to index
    %c7_238 = arith.constant 7 : index
    %560 = memref.load %arg2[%559, %c7_238] : memref<8x8xi32, #tpu.memory_space<smem>>
    %561 = arith.cmpi sge, %560, %0 : i32
    %c256_i32_239 = arith.constant 256 : i32
    %562 = arith.addi %0, %c256_i32_239 : i32
    %563 = arith.cmpi slt, %560, %562 : i32
    %564 = arith.andi %561, %563 : i1
    %c8_i32_240 = arith.constant 8 : i32
    %565 = arith.muli %arg0, %c8_i32_240 : i32
    %c6_i32_241 = arith.constant 6 : i32
    %566 = arith.addi %565, %c6_i32_241 : i32
    %567 = arith.index_cast %566 : i32 to index
    %c7_242 = arith.constant 7 : index
    %568 = memref.load %arg2[%567, %c7_242] : memref<8x8xi32, #tpu.memory_space<smem>>
    %569 = arith.cmpi sge, %568, %0 : i32
    %c256_i32_243 = arith.constant 256 : i32
    %570 = arith.addi %0, %c256_i32_243 : i32
    %571 = arith.cmpi slt, %568, %570 : i32
    %572 = arith.andi %569, %571 : i1
    %c8_i32_244 = arith.constant 8 : i32
    %573 = arith.muli %arg0, %c8_i32_244 : i32
    %c7_i32_245 = arith.constant 7 : i32
    %574 = arith.addi %573, %c7_i32_245 : i32
    %575 = arith.index_cast %574 : i32 to index
    %c7_246 = arith.constant 7 : index
    %576 = memref.load %arg2[%575, %c7_246] : memref<8x8xi32, #tpu.memory_space<smem>>
    %577 = arith.cmpi sge, %576, %0 : i32
    %c256_i32_247 = arith.constant 256 : i32
    %578 = arith.addi %0, %c256_i32_247 : i32
    %579 = arith.cmpi slt, %576, %578 : i32
    %580 = arith.andi %577, %579 : i1
    %581 = arith.ori %524, %532 : i1
    %582 = arith.ori %581, %540 : i1
    %583 = arith.ori %582, %548 : i1
    %584 = arith.ori %583, %556 : i1
    %585 = arith.ori %584, %564 : i1
    %586 = arith.ori %585, %572 : i1
    %587 = arith.ori %586, %580 : i1
    %588 = arith.extui %587 : i1 to i32
    %c0_i32_248 = arith.constant 0 : i32
    %589 = arith.cmpi ne, %588, %c0_i32_248 : i32
    scf.if %589 {
      %c0_251 = arith.constant 0 : index
      %c7_252 = arith.constant 7 : index
      %593 = vector.load %arg3[%c0_251, %c7_252] : memref<8x8xi32, #tpu.memory_space<vmem>>, vector<8x1xi32>
      %c0_253 = arith.constant 0 : index
      %c7_254 = arith.constant 7 : index
      %594 = vector.load %arg4[%c0_253, %c7_254] : memref<8x8xf32, #tpu.memory_space<vmem>>, vector<8x1xf32>
      %595 = vector.broadcast %593 : vector<8x1xi32> to vector<8x256xi32>
      %596 = arith.cmpi eq, %595, %3 : vector<8x256xi32>
      %c0_255 = arith.constant 0 : index
      %c0_256 = arith.constant 0 : index
      %597 = vector.load %arg5[%c0_255, %c0_256] : memref<8x256xf32, #tpu.memory_space<vmem>>, vector<8x256xf32>
      %cst_257 = arith.constant 0.000000e+00 : f32
      %598 = vector.shape_cast %594 : vector<8x1xf32> to vector<8x1xf32>
      %599 = vector.broadcast %598 : vector<8x1xf32> to vector<8x256xf32>
      %600 = vector.broadcast %cst_257 : f32 to vector<8x256xf32>
      %601 = arith.select %596, %599, %600 : vector<8x256xi1>, vector<8x256xf32>
      %602 = arith.maximumf %597, %601 : vector<8x256xf32>
      %c0_258 = arith.constant 0 : index
      %c0_259 = arith.constant 0 : index
      %603 = vector.load %arg5[%c0_258, %c0_259] : memref<8x256xf32, #tpu.memory_space<vmem>>, vector<8x256xf32>
      tpu.vector_store %arg5[%c0_258, %c0_259], %602 {strides = array<i32>} : memref<8x256xf32, #tpu.memory_space<vmem>>, vector<8x256xf32>,
    } else {
    }
    %c0_i32_249 = arith.constant 0 : i32
    %590 = arith.cmpi eq, %arg1, %c0_i32_249 : i32
    %591 = arith.extui %590 : i1 to i32
    %c0_i32_250 = arith.constant 0 : i32
    %592 = arith.cmpi ne, %591, %c0_i32_250 : i32
    scf.if %592 {
      %593 = tpu.iota {dimensions = array<i32: 1>} : vector<1x256xi32>
      %c0_i32_251 = arith.constant 0 : i32
      %594 = vector.broadcast %c0_i32_251 : i32 to vector<1x256xi32>
      %595 = arith.cmpi eq, %593, %594 : vector<1x256xi32>
      %c1_i32_252 = arith.constant 1 : i32
      %596 = vector.broadcast %c1_i32_252 : i32 to vector<1x256xi32>
      %597 = arith.cmpi eq, %593, %596 : vector<1x256xi32>
      %598 = arith.ori %595, %597 : vector<1x256xi1>
      %c2_i32_253 = arith.constant 2 : i32
      %599 = vector.broadcast %c2_i32_253 : i32 to vector<1x256xi32>
      %600 = arith.cmpi eq, %593, %599 : vector<1x256xi32>
      %601 = arith.ori %598, %600 : vector<1x256xi1>
      %c3_i32_254 = arith.constant 3 : i32
      %602 = vector.broadcast %c3_i32_254 : i32 to vector<1x256xi32>
      %603 = arith.cmpi eq, %593, %602 : vector<1x256xi32>
      %604 = arith.ori %601, %603 : vector<1x256xi1>
      %c0_255 = arith.constant 0 : index
      %c0_256 = arith.constant 0 : index
      %605 = vector.load %arg5[%c0_255, %c0_256] : memref<8x256xf32, #tpu.memory_space<vmem>>, vector<8x256xf32>
      %cst_257 = arith.constant 0.000000e+00 : f32
      %606 = vector.shape_cast %604 : vector<1x256xi1> to vector<1x256xi1>
      %607 = vector.broadcast %606 : vector<1x256xi1> to vector<8x256xi1>
      %608 = vector.broadcast %cst_257 : f32 to vector<8x256xf32>
      %609 = arith.select %607, %608, %605 : vector<8x256xi1>, vector<8x256xf32>
      %c0_258 = arith.constant 0 : index
      %c0_259 = arith.constant 0 : index
      %610 = vector.load %arg5[%c0_258, %c0_259] : memref<8x256xf32, #tpu.memory_space<vmem>>, vector<8x256xf32>
      tpu.vector_store %arg5[%c0_258, %c0_259], %609 {strides = array<i32>} : memref<8x256xf32, #tpu.memory_space<vmem>>, vector<8x256xf32>,
    } else {
    }
    return
  }
  func.func @transform_0(%arg0: i32, %arg1: i32, %arg2: memref<8x8xi32, #tpu.memory_space<smem>>) -> (i32, i32) {
    %c0_i32 = arith.constant 0 : i32
    %c0_i32_0 = arith.constant 0 : i32
    return %arg0, %c0_i32 : i32, i32
  }
  func.func @transform_1(%arg0: i32, %arg1: i32, %arg2: memref<8x8xi32, #tpu.memory_space<smem>>) -> (i32, i32) {
    %c0_i32 = arith.constant 0 : i32
    %c0_i32_0 = arith.constant 0 : i32
    return %arg0, %c0_i32 : i32, i32
  }
  func.func @transform_2(%arg0: i32, %arg1: i32, %arg2: memref<8x8xi32, #tpu.memory_space<smem>>) -> (i32, i32) {
    %c0_i32 = arith.constant 0 : i32
    return %arg0, %arg1 : i32, i32
  }
}

</mosaic_0001>

<llo_original>
// kernel: dense_sparse_encode.2
$region0: #{dense_sparse_encode.2}
  #allocation0 [shape = 'u32[]', space=smem, size = 0x4, offset = 0x4, fixed_abs, tag = 'smem constant byte address 0x4 - core index']
  #allocation1 [shape = 'u32[72,128]{1,0:T(1,128)}', space=vmem, size = 0x9000, scoped, tag = 'internal scratch']
  %s0 = inlined_call_operand.vmem [shape: f32[8,8,32], index: 0, kind: input, shape index: {}]
  %s1 = inlined_call_operand.vmem [shape: f32[8,32], index: 1, kind: input, shape index: {}]
  %s2 = inlined_call_operand.vmem [shape: f32[1,32], index: 2, kind: input, shape index: {}]
  %s3 = inlined_call_operand.vmem [shape: f32[8,8], index: 3, kind: output, shape index: {0}]
  %s4 = inlined_call_operand.vmem [shape: f32[8,32], index: 4, kind: output, shape index: {1}]
  %5 = xla_tuple %s3, %s4
  %s6 = sld [smem:[#allocation0]]
  $region30: #{dense_sparse_encode.2} parent=0
    _
  %s8 = ssub.s32 1, %s6
  %s9 = scalar_select 0, %s8, %s6
  // Predicated region
  $region2: #{dense_sparse_encode.2} parent=0 // pred_check
    _
  $region3: #{dense_sparse_encode.2} parent=0 // pred_check_branch
    %11 = sbr.rel (0) target = $region5
  $region4: #{dense_sparse_encode.2} parent=0 // pred_region
    _
  $region5: #{dense_sparse_encode.2} parent=0 // pred_fallthru
    _
  // Predicated region
  $region6: #{dense_sparse_encode.2} parent=0 // pred_check
    _
  $region7: #{dense_sparse_encode.2} parent=0 // pred_check_branch
    %13 = sbr.rel (0) target = $region9
  $region8: #{dense_sparse_encode.2} parent=0 // pred_region
    _
  $region9: #{dense_sparse_encode.2} parent=0 // pred_fallthru
    _
  // Predicated region
  $region10: #{dense_sparse_encode.2} parent=0 // pred_check
    _
  $region11: #{dense_sparse_encode.2} parent=0 // pred_check_branch
    %15 = sbr.rel (0) target = $region13
  $region12: #{dense_sparse_encode.2} parent=0 // pred_region
    _
  $region13: #{dense_sparse_encode.2} parent=0 // pred_fallthru
    _
  %v16 = vld [vmem:[%s0] sm:$0xff]
  %v17 = vld [vmem:[%s0 + $0x8] sm:$0xff]
  %v18 = vld [vmem:[%s0 + $0x10] sm:$0xff]
  %v19 = vld [vmem:[%s0 + $0x18] sm:$0xff]
  %v20 = vld [vmem:[%s0 + $0x20] sm:$0xff]
  %v21 = vld [vmem:[%s0 + $0x28] sm:$0xff]
  %v22 = vld [vmem:[%s0 + $0x30] sm:$0xff]
  %v23 = vld [vmem:[%s0 + $0x38] sm:$0xff]
  %v24 = vld [vmem:[%s2] sm:$0x1]
  %v26 = vperm.slane %v24, 0
  %v28 = vmul.f32 %v16, %v26
  %v29 = vmul.f32 %v17, %v26
  %v30 = vmul.f32 %v18, %v26
  %v31 = vmul.f32 %v19, %v26
  %v32 = vmul.f32 %v20, %v26
  %v33 = vmul.f32 %v21, %v26
  %v34 = vmul.f32 %v22, %v26
  %v35 = vmul.f32 %v23, %v26
  %vm36 = vcmask 261120
  %v37 = vsel %vm36, %v28, 0.0
  %38 = vadd.xlane.f32.xlu0 %v37
  %v39 = vpop.xlane.xlu0 %38
  %v40 = vsel %vm36, %v29, 0.0
  %41 = vadd.xlane.f32.xlu0 %v40
  %v42 = vpop.xlane.xlu0 %41
  %v43 = vsel %vm36, %v30, 0.0
  %44 = vadd.xlane.f32.xlu0 %v43
  %v45 = vpop.xlane.xlu0 %44
  %v46 = vsel %vm36, %v31, 0.0
  %47 = vadd.xlane.f32.xlu0 %v46
  %v48 = vpop.xlane.xlu0 %47
  %v49 = vsel %vm36, %v32, 0.0
  %50 = vadd.xlane.f32.xlu0 %v49
  %v51 = vpop.xlane.xlu0 %50
  %v52 = vsel %vm36, %v33, 0.0
  %53 = vadd.xlane.f32.xlu0 %v52
  %v54 = vpop.xlane.xlu0 %53
  %v55 = vsel %vm36, %v34, 0.0
  %56 = vadd.xlane.f32.xlu0 %v55
  %v57 = vpop.xlane.xlu0 %56
  %v58 = vsel %vm36, %v35, 0.0
  %59 = vadd.xlane.f32.xlu0 %v58
  %v60 = vpop.xlane.xlu0 %59
  %v61 = vmax.f32 %v39, 0.0
  %v62 = vmax.f32 %v42, 0.0
  %v63 = vmax.f32 %v45, 0.0
  %v64 = vmax.f32 %v48, 0.0
  %v65 = vmax.f32 %v51, 0.0
  %v66 = vmax.f32 %v54, 0.0
  %v67 = vmax.f32 %v57, 0.0
  %v68 = vmax.f32 %v60, 0.0
  %v77 = vlaneseq
  %v78 = vand.u32 %v77, 127
  %v79 = vperm.slane %v61, %v78
  %v80 = vperm.slane %v62, %v78
  %v81 = vperm.slane %v63, %v78
  %v82 = vperm.slane %v64, %v78
  %v83 = vperm.slane %v65, %v78
  %v84 = vperm.slane %v66, %v78
  %v85 = vperm.slane %v67, %v78
  %v86 = vperm.slane %v68, %v78
  %vm87 = vcmask 1041409
  %v88 = vsel %vm87, %v80, %v79
  %vm89 = vcmask 1042434
  %v90 = vsel %vm89, %v81, %v88
  %vm91 = vcmask 1043459
  %v92 = vsel %vm91, %v82, %v90
  %vm93 = vcmask 1044484
  %v94 = vsel %vm93, %v83, %v92
  %vm95 = vcmask 1045509
  %v96 = vsel %vm95, %v84, %v94
  %vm97 = vcmask 1046534
  %v98 = vsel %vm97, %v85, %v96
  %vm99 = vcmask 1047559
  %v100 = vsel %vm99, %v86, %v98
  %vm102 = vcmask 64512
  %103 = vst.msk [vmem:[%s3] sm:$0xff] %vm102, %v100
  %v104 = vld [vmem:[%s1] sm:$0xff]
  %v105 = vmul.f32 %v104, %v104
  %v106 = vsel %vm36, %v105, 0.0
  %107 = vadd.xlane.f32.xlu0 %v106
  %v108 = vpop.xlane.xlu0 %107
  %v109 = vrsqrt.pop %v108
  %v110 = vmul.f32 %v109, %v108
  %v111 = vmul.f32 %v110, %v109
  %v112 = vmul.f32 0.5, %v111
  %v113 = vsub.f32 1.5, %v112
  %v114 = vmul.f32 %v109, %v113
  %v115 = vmul.f32 %v108, %v114
  %vm116 = vcmp.eq.f32.partialorder %v108, inf
  %v117 = vsel %vm116, %v108, %v115
  %vm118 = vcmp.eq.f32.partialorder %v108, 0.0
  %v119 = vand.u32 %v108, 2147483648
  %v120 = vsel %vm118, %v119, %v117
  %v121 = vmax.f32 %v120, 1e-12
  %v122 = vrcp.pop %v121
  %v123 = vmul.f32 %v121, %v122
  %v124 = vsub.f32 1.0, %v123
  %v125 = vmul.f32 %v122, %v124
  %v126 = vadd.f32 %v122, %v125
  %vm127 = vweird.f32 %v121
  %vm128 = vweird.f32 %v122
  %vm129 = vmor %vm127, %vm128
  %v130 = vsel %vm129, %v122, %v126
  %v131 = vand.u32 2147483647, %v121
  %vm132 = vcmp.eq.f32.partialorder %v131, 8.507059e+37
  %v133 = vand.u32 %v121, 2147483648
  %v134 = vor.u32 1.1754944e-38, %v133
  %v135 = vsel %vm132, %v134, %v130
  %v136 = vmul.f32 %v104, %v135
  %137 = vst.msk [vmem:[%s4] sm:$0xff] %vm36, %v136
  // Predicated region
  $region14: #{dense_sparse_encode.2} parent=0 // pred_check
    _
  $region15: #{dense_sparse_encode.2} parent=0 // pred_check_branch
    %139 = sbr.rel (0) target = $region17
  $region16: #{dense_sparse_encode.2} parent=0 // pred_region
    _
  $region17: #{dense_sparse_encode.2} parent=0 // pred_fallthru
    _
  // Predicated region
  $region18: #{dense_sparse_encode.2} parent=0 // pred_check
    _
  $region19: #{dense_sparse_encode.2} parent=0 // pred_check_branch
    %141 = sbr.rel (0) target = $region21
  $region20: #{dense_sparse_encode.2} parent=0 // pred_region
    _
  $region21: #{dense_sparse_encode.2} parent=0 // pred_fallthru
    _
  // Predicated region
  $region22: #{dense_sparse_encode.2} parent=0 // pred_check
    _
  $region23: #{dense_sparse_encode.2} parent=0 // pred_check_branch
    %143 = sbr.rel (0) target = $region25
  $region24: #{dense_sparse_encode.2} parent=0 // pred_region
    _
  $region25: #{dense_sparse_encode.2} parent=0 // pred_fallthru
    _
  // Predicated region
  $region26: #{dense_sparse_encode.2} parent=0 // pred_check
    _
  $region27: #{dense_sparse_encode.2} parent=0 // pred_check_branch
    %145 = sbr.rel (0) target = $region29
  $region28: #{dense_sparse_encode.2} parent=0 // pred_region
    _
  $region29: #{dense_sparse_encode.2} parent=0 // pred_fallthru
    _

// kernel: dense_sparse_encode.3
$region0: #{dense_sparse_encode.3}
  #allocation0 [shape = 'u32[]', space=smem, size = 0x4, offset = 0x4, fixed_abs, tag = 'smem constant byte address 0x4 - core index']
  #allocation1 [shape = 'u32[72,128]{1,0:T(1,128)}', space=vmem, size = 0x9000, scoped, tag = 'internal scratch']
  #allocation2 [shape = 's32[1]{0}', space=sflag, size = 0x4, scoped, tag = 'scoped memory for dense_sparse_encode.3']
  #allocation3 [shape = 'u8[4096]{0}', space=smem, size = 0x1000, scoped, tag = 'prefetched SMEM operand 0']
  %s0 = inlined_call_operand.vmem [shape: s32[8,8], index: 0, kind: input, shape index: {}, may-alias: {0,1}]
  %s1 = inlined_call_operand.vmem [shape: s32[8,8], index: 1, kind: input, shape index: {}, may-alias: {0,1}]
  %s2 = inlined_call_operand.vmem [shape: f32[8,8], index: 2, kind: input, shape index: {}]
  %s3 = inlined_call_operand.vmem [shape: f32[8,512], index: 3, kind: output, shape index: {}]
  %s4 = sld [smem:[#allocation0]]
  $region77: #{dense_sparse_encode.3} parent=0
    _
  %s6 = ssub.s32 1, %s4
  %s7 = scalar_select 0, %s6, %s4
  %s9 = sshll.u32 %s0, 4
  %s10 = int_to_ptr.vmem [resolvable:$true] %s9
  %12 = dma.vmem_to_smem %s10, 128, [#allocation3], [#allocation2]
  %14 = dma.done [#allocation2], 128
  %15 = sfence
  loop: start=0, step=1, limit=4
  $region2: #{dense_sparse_encode.3} parent=0 // loop_pre_header
    _
  $region3: #{dense_sparse_encode.3} parent=0 // loop_header
    %s17 = sphi 0, %s21
    %p18 = scmp.ge.s32.totalorder %s17, 4
    %s24 = sphi 0, %s36
    %s25 = sphi 0, %s32
    %s26 = sphi 0, %s24
    %s27 = sphi 0, %s25
    %s28 = sphi 0, %s26
    %s29 = sphi 0, %s27
    %s39 = sphi 0, %s41
    %s42 = sphi 0, %s39
    %s43 = sphi 0, %s42
    %s59 = sphi 0, %s43
    %s65 = sphi 0, %s67
    %s68 = sphi 0, %s65
    %s69 = sphi 0, %s68
    %s85 = sphi 0, %s69
    %s93 = sphi 0, %s95
    %s96 = sphi 0, %s93
    %s97 = sphi 0, %s96
    %s113 = sphi 0, %s97
  $region4: #{dense_sparse_encode.3} parent=0 // loop_header_branch
    %20 = sbr.rel (%p18) target = $region8
  $region5: #{dense_sparse_encode.3} parent=0 // loop_body
    %s22 = ssub.s32 %s17, 1
    %s23 = ssub.s32 %s17, 2
    %s30 = sadd.s32 1, %s25
    %p31 = scmp.ge.s32.totalorder %s30, 2
    %s32 = scalar_select %p31, 0, %s30
    %s33 = sadd.s32 1, %s24
    %s34 = scalar_select %p31, %s33, %s24
    %p35 = scmp.ge.s32.totalorder %s34, 1
    %s36 = scalar_select %p35, 0, %s34
    %s37 = ssub.s32 %s24, %s36
    %p38 = scmp.eq.s32.totalorder %s37, 0
    %s40 = sadd.s32 %s39, 1
    %s41 = scalar_select %p38, %s39, %s40
    %p44 = pneg %p38
    %p45 = scmp.eq.s32.totalorder %s17, 1
    %p46 = por %p44, %p45
    %p47 = scmp.ne.s32.totalorder %s39, %s42
    %p48 = scmp.eq.s32.totalorder %s17, 0
    %p49 = por %p47, %p48
    %p50 = scmp.ne.s32.totalorder %s39, %s42
    %p51 = scmp.eq.s32.totalorder %s22, 1
    %p52 = por %p50, %p51
    %p53 = scmp.ne.s32.totalorder %s42, %s43
    %p54 = scmp.eq.s32.totalorder %s22, 0
    %p55 = por %p53, %p54
    %p56 = scmp.ne.s32.totalorder %s42, %s43
    %p57 = scmp.eq.s32.totalorder %s23, 1
    %p58 = por %p56, %p57
    %p60 = scmp.ne.s32.totalorder %s43, %s59
    %p61 = scmp.eq.s32.totalorder %s23, 0
    %p62 = por %p60, %p61
    %s63 = ssub.s32 %s24, %s36
    %p64 = scmp.eq.s32.totalorder %s63, 0
    %s66 = sadd.s32 %s65, 1
    %s67 = scalar_select %p64, %s65, %s66
    %p70 = pneg %p64
    %p71 = scmp.eq.s32.totalorder %s17, 1
    %p72 = por %p70, %p71
    %p73 = scmp.ne.s32.totalorder %s65, %s68
    %p74 = scmp.eq.s32.totalorder %s17, 0
    %p75 = por %p73, %p74
    %p76 = scmp.ne.s32.totalorder %s65, %s68
    %p77 = scmp.eq.s32.totalorder %s22, 1
    %p78 = por %p76, %p77
    %p79 = scmp.ne.s32.totalorder %s68, %s69
    %p80 = scmp.eq.s32.totalorder %s22, 0
    %p81 = por %p79, %p80
    %p82 = scmp.ne.s32.totalorder %s68, %s69
    %p83 = scmp.eq.s32.totalorder %s23, 1
    %p84 = por %p82, %p83
    %p86 = scmp.ne.s32.totalorder %s69, %s85
    %p87 = scmp.eq.s32.totalorder %s23, 0
    %p88 = por %p86, %p87
    %s89 = ssub.s32 %s24, %s36
    %s90 = ssub.s32 %s25, %s32
    %s91 = sor.u32 %s89, %s90
    %p92 = scmp.eq.s32.totalorder %s91, 0
    %s94 = sadd.s32 %s93, 1
    %s95 = scalar_select %p92, %s93, %s94
    %p98 = pneg %p92
    %p99 = scmp.eq.s32.totalorder %s17, 1
    %p100 = por %p98, %p99
    %p101 = scmp.ne.s32.totalorder %s93, %s96
    %p102 = scmp.eq.s32.totalorder %s17, 0
    %p103 = por %p101, %p102
    %p104 = scmp.ne.s32.totalorder %s93, %s96
    %p105 = scmp.eq.s32.totalorder %s22, 1
    %p106 = por %p104, %p105
    %p107 = scmp.ne.s32.totalorder %s96, %s97
    %p108 = scmp.eq.s32.totalorder %s22, 0
    %p109 = por %p107, %p108
    %p110 = scmp.ne.s32.totalorder %s96, %s97
    %p111 = scmp.eq.s32.totalorder %s23, 1
    %p112 = por %p110, %p111
    %p114 = scmp.ne.s32.totalorder %s97, %s113
    %p115 = scmp.eq.s32.totalorder %s23, 0
    %p116 = por %p114, %p115
    %p117 = scmp.le.s32.totalorder 1, %s17
    %p118 = scmp.lt.s32.totalorder %s17, 3
    %p119 = pnand %p117, %p118
    %p120 = pneg %p119
    // Predicated region
    $region9: #{dense_sparse_encode.3} parent=5 // pred_check
      _
    $region10: #{dense_sparse_encode.3} parent=5 // pred_check_branch
      %122 = sbr.rel (%p119) target = $region12
    $region11: #{dense_sparse_encode.3} parent=5 // pred_region
      %s123 = ssub.s32 %s17, 1
      // Predicated region
      $region13: #{dense_sparse_encode.3} parent=11 // pred_check
        %p124 = pneg %p55
      $region14: #{dense_sparse_encode.3} parent=11 // pred_check_branch
        %126 = sbr.rel (%p124) target = $region16
      $region15: #{dense_sparse_encode.3} parent=11 // pred_region
        %p127 = scmp.lt.s32.totalorder %s26, 0
        %s128 = scalar_select %p127, %s26, 0
        %s129 = smul.addr %s128, 8
        %s130 = scalar_lea.vmem %s1, %s129
      $region16: #{dense_sparse_encode.3} parent=11 // pred_fallthru
        _
      // Predicated region
      $region17: #{dense_sparse_encode.3} parent=11 // pred_check
        %p131 = pneg %p81
      $region18: #{dense_sparse_encode.3} parent=11 // pred_check_branch
        %133 = sbr.rel (%p131) target = $region20
      $region19: #{dense_sparse_encode.3} parent=11 // pred_region
        %p134 = scmp.lt.s32.totalorder %s26, 0
        %s135 = scalar_select %p134, %s26, 0
        %s136 = smul.addr %s135, 8
        %s137 = scalar_lea.vmem %s2, %s136
      $region20: #{dense_sparse_encode.3} parent=11 // pred_fallthru
        _
    $region12: #{dense_sparse_encode.3} parent=5 // pred_fallthru
      _
    %p138 = scmp.lt.s32.totalorder %s17, 2
    // Predicated region
    $region21: #{dense_sparse_encode.3} parent=5 // pred_check
      %p139 = pneg %p138
    $region22: #{dense_sparse_encode.3} parent=5 // pred_check_branch
      %141 = sbr.rel (%p139) target = $region24
    $region23: #{dense_sparse_encode.3} parent=5 // pred_region
      _
    $region24: #{dense_sparse_encode.3} parent=5 // pred_fallthru
      _
    %p142 = scmp.le.s32.totalorder 1, %s17
    %p143 = scmp.lt.s32.totalorder %s17, 3
    %p144 = pnand %p142, %p143
    %p145 = pneg %p144
    // Predicated region
    $region25: #{dense_sparse_encode.3} parent=5 // pred_check
      _
    $region26: #{dense_sparse_encode.3} parent=5 // pred_check_branch
      %147 = sbr.rel (%p144) target = $region28
    $region27: #{dense_sparse_encode.3} parent=5 // pred_region
      %s148 = ssub.s32 %s17, 1
      %p149 = scmp.lt.s32.totalorder %s26, 0
      %s150 = scalar_select %p149, %s26, 0
      %s151 = smul.addr %s150, 8
      %s152 = scalar_lea.vmem %s1, %s151
      %p153 = pneg %p55
      %p154 = pneg %p52
      %p155 = scmp.lt.s32.totalorder %s26, 0
      %s156 = scalar_select %p155, %s26, 0
      %s157 = smul.addr %s156, 8
      %s158 = scalar_lea.vmem %s2, %s157
      %p159 = pneg %p81
      %p160 = pneg %p78
      %p161 = pneg %p109
      %p162 = pneg %p106
      %s163 = smul.u32 2, %s27
      %p164 = scmp.lt.s32.totalorder %s26, 0
      %s165 = scalar_select %p164, %s26, 0
      %p166 = scmp.lt.s32.totalorder %s163, 3
      %s167 = scalar_select %p166, %s163, 3
      %s168 = smul.addr %s165, 4
      %s169 = sadd.s32 %s167, %s168
      %s170 = smul.addr %s169, 8
      %s171 = scalar_lea.vmem %s3, %s170
      %p172 = scmp.lt.s32.totalorder %s26, 0
      %s173 = scalar_select %p172, %s26, 0
      %s174 = smul.addr %s173, 8
      %s175 = scalar_lea.vmem %s1, %s174
      %p176 = scmp.lt.s32.totalorder %s26, 0
      %s177 = scalar_select %p176, %s26, 0
      %s178 = smul.addr %s177, 8
      %s179 = scalar_lea.vmem %s2, %s178
      %s180 = smul.u32 2, %s27
      %p181 = scmp.lt.s32.totalorder %s26, 0
      %s182 = scalar_select %p181, %s26, 0
      %p183 = scmp.lt.s32.totalorder %s180, 3
      %s184 = scalar_select %p183, %s180, 3
      %s185 = smul.addr %s182, 4
      %s186 = sadd.s32 %s184, %s185
      %s187 = smul.addr %s186, 8
      %s188 = scalar_lea.vmem %s3, %s187
      %s189 = smul.u32 2, %s27
      %s190 = smul.u32 %s27, 256
      %v191 = vlaneseq
      %v192 = vand.u32 %v191, 127
      %v193 = vadd.s32 %v192, 128
      %v194 = vstv %s190
      %v195 = vadd.s32 %v192, %v194
      %v196 = vadd.s32 %v193, %v194
      %197 = vst [vmem:[%s188] sm:$0xff] 0.0
      %198 = vst [vmem:[%s188 + $0x8] sm:$0xff] 0.0
      %s199 = smul.u32 %s26, 8
      %s200 = smul.u32 %s199, 128
      %s201 = sld [smem:[#allocation3 + %s200]]
      %p202 = scmp.ge.s32.totalorder %s201, %s190
      %s203 = sadd.s32 %s190, 256
      %p204 = scmp.lt.s32.totalorder %s201, %s203
      %p205 = pnand %p202, %p204
      %p206 = pneg %p205
      %s207 = sadd.s32 %s199, 1
      %s208 = smul.u32 %s207, 128
      %s209 = sld [smem:[#allocation3 + %s208]]
      %p210 = scmp.ge.s32.totalorder %s209, %s190
      %p211 = scmp.lt.s32.totalorder %s209, %s203
      %p212 = pnand %p210, %p211
      %p213 = pneg %p212
      %s214 = sadd.s32 %s199, 2
      %s215 = smul.u32 %s214, 128
      %s216 = sld [smem:[#allocation3 + %s215]]
      %p217 = scmp.ge.s32.totalorder %s216, %s190
      %p218 = scmp.lt.s32.totalorder %s216, %s203
      %p219 = pnand %p217, %p218
      %p220 = pneg %p219
      %s221 = sadd.s32 %s199, 3
      %s222 = smul.u32 %s221, 128
      %s223 = sld [smem:[#allocation3 + %s222]]
      %p224 = scmp.ge.s32.totalorder %s223, %s190
      %p225 = scmp.lt.s32.totalorder %s223, %s203
      %p226 = pnand %p224, %p225
      %p227 = pneg %p226
      %s228 = sadd.s32 %s199, 4
      %s229 = smul.u32 %s228, 128
      %s230 = sld [smem:[#allocation3 + %s229]]
      %p231 = scmp.ge.s32.totalorder %s230, %s190
      %p232 = scmp.lt.s32.totalorder %s230, %s203
      %p233 = pnand %p231, %p232
      %p234 = pneg %p233
      %s235 = sadd.s32 %s199, 5
      %s236 = smul.u32 %s235, 128
      %s237 = sld [smem:[#allocation3 + %s236]]
      %p238 = scmp.ge.s32.totalorder %s237, %s190
      %p239 = scmp.lt.s32.totalorder %s237, %s203
      %p240 = pnand %p238, %p239
      %p241 = pneg %p240
      %s242 = sadd.s32 %s199, 6
      %s243 = smul.u32 %s242, 128
      %s244 = sld [smem:[#allocation3 + %s243]]
      %p245 = scmp.ge.s32.totalorder %s244, %s190
      %p246 = scmp.lt.s32.totalorder %s244, %s203
      %p247 = pnand %p245, %p246
      %p248 = pneg %p247
      %s249 = sadd.s32 %s199, 7
      %s250 = smul.u32 %s249, 128
      %s251 = sld [smem:[#allocation3 + %s250]]
      %p252 = scmp.ge.s32.totalorder %s251, %s190
      %p253 = scmp.lt.s32.totalorder %s251, %s203
      %p254 = pnand %p252, %p253
      %p255 = pneg %p254
      %p256 = por %p206, %p213
      %p257 = por %p256, %p220
      %p258 = por %p257, %p227
      %p259 = por %p258, %p234
      %p260 = por %p259, %p241
      %p261 = por %p260, %p248
      %p262 = por %p261, %p255
      // Predicated region
      $region29: #{dense_sparse_encode.3} parent=27 // pred_check
        %p263 = pneg %p262
      $region30: #{dense_sparse_encode.3} parent=27 // pred_check_branch
        %265 = sbr.rel (%p263) target = $region32
      $region31: #{dense_sparse_encode.3} parent=27 // pred_region
        %v266 = vld [vmem:[%s175] sm:$0xff]
        %v267 = vld [vmem:[%s179] sm:$0xff]
        %268 = vset.pattern.permute.xlu0 0
        %269 = vperm.xlu0 %268, %v266
        %v270 = vpop.permute.xlu0 %269
        %vm271 = vcmp.eq.s32.totalorder %v270, %v195
        %vm272 = vcmp.eq.s32.totalorder %v270, %v196
        %v273 = vld [vmem:[%s188] sm:$0xff]
        %v274 = vld [vmem:[%s188 + $0x8] sm:$0xff]
        %276 = vset.pattern.permute.xlu0 0
        %277 = vperm.xlu0 %276, %v267
        %v278 = vpop.permute.xlu0 %277
        %v280 = vsel %vm271, %v278, 0.0
        %v281 = vsel %vm272, %v278, 0.0
        %v282 = vmax.f32 %v273, %v280
        %v283 = vmax.f32 %v274, %v281
        %284 = vst [vmem:[%s188] sm:$0xff] %v282
        %285 = vst [vmem:[%s188 + $0x8] sm:$0xff] %v283
      $region32: #{dense_sparse_encode.3} parent=27 // pred_fallthru
        _
      %s286 = sadd.s32 %s200, 1
      %s287 = sld [smem:[#allocation3 + %s286]]
      %p288 = scmp.ge.s32.totalorder %s287, %s190
      %p289 = scmp.lt.s32.totalorder %s287, %s203
      %p290 = pnand %p288, %p289
      %p291 = pneg %p290
      %s292 = sadd.s32 %s208, 1
      %s293 = sld [smem:[#allocation3 + %s292]]
      %p294 = scmp.ge.s32.totalorder %s293, %s190
      %p295 = scmp.lt.s32.totalorder %s293, %s203
      %p296 = pnand %p294, %p295
      %p297 = pneg %p296
      %s298 = sadd.s32 %s215, 1
      %s299 = sld [smem:[#allocation3 + %s298]]
      %p300 = scmp.ge.s32.totalorder %s299, %s190
      %p301 = scmp.lt.s32.totalorder %s299, %s203
      %p302 = pnand %p300, %p301
      %p303 = pneg %p302
      %s304 = sadd.s32 %s222, 1
      %s305 = sld [smem:[#allocation3 + %s304]]
      %p306 = scmp.ge.s32.totalorder %s305, %s190
      %p307 = scmp.lt.s32.totalorder %s305, %s203
      %p308 = pnand %p306, %p307
      %p309 = pneg %p308
      %s310 = sadd.s32 %s229, 1
      %s311 = sld [smem:[#allocation3 + %s310]]
      %p312 = scmp.ge.s32.totalorder %s311, %s190
      %p313 = scmp.lt.s32.totalorder %s311, %s203
      %p314 = pnand %p312, %p313
      %p315 = pneg %p314
      %s316 = sadd.s32 %s236, 1
      %s317 = sld [smem:[#allocation3 + %s316]]
      %p318 = scmp.ge.s32.totalorder %s317, %s190
      %p319 = scmp.lt.s32.totalorder %s317, %s203
      %p320 = pnand %p318, %p319
      %p321 = pneg %p320
      %s322 = sadd.s32 %s243, 1
      %s323 = sld [smem:[#allocation3 + %s322]]
      %p324 = scmp.ge.s32.totalorder %s323, %s190
      %p325 = scmp.lt.s32.totalorder %s323, %s203
      %p326 = pnand %p324, %p325
      %p327 = pneg %p326
      %s328 = sadd.s32 %s250, 1
      %s329 = sld [smem:[#allocation3 + %s328]]
      %p330 = scmp.ge.s32.totalorder %s329, %s190
      %p331 = scmp.lt.s32.totalorder %s329, %s203
      %p332 = pnand %p330, %p331
      %p333 = pneg %p332
      %p334 = por %p291, %p297
      %p335 = por %p334, %p303
      %p336 = por %p335, %p309
      %p337 = por %p336, %p315
      %p338 = por %p337, %p321
      %p339 = por %p338, %p327
      %p340 = por %p339, %p333
      // Predicated region
      $region33: #{dense_sparse_encode.3} parent=27 // pred_check
        %p341 = pneg %p340
      $region34: #{dense_sparse_encode.3} parent=27 // pred_check_branch
        %343 = sbr.rel (%p341) target = $region36
      $region35: #{dense_sparse_encode.3} parent=27 // pred_region
        %v344 = vld [vmem:[%s175] sm:$0xff]
        %v345 = vld [vmem:[%s179] sm:$0xff]
        %346 = vset.pattern.permute.xlu0 1
        %347 = vperm.xlu0 %346, %v344
        %v348 = vpop.permute.xlu0 %347
        %vm349 = vcmp.eq.s32.totalorder %v348, %v195
        %vm350 = vcmp.eq.s32.totalorder %v348, %v196
        %v351 = vld [vmem:[%s188] sm:$0xff]
        %v352 = vld [vmem:[%s188 + $0x8] sm:$0xff]
        %354 = vset.pattern.permute.xlu0 1
        %355 = vperm.xlu0 %354, %v345
        %v356 = vpop.permute.xlu0 %355
        %v358 = vsel %vm349, %v356, 0.0
        %v359 = vsel %vm350, %v356, 0.0
        %v360 = vmax.f32 %v351, %v358
        %v361 = vmax.f32 %v352, %v359
        %362 = vst [vmem:[%s188] sm:$0xff] %v360
        %363 = vst [vmem:[%s188 + $0x8] sm:$0xff] %v361
      $region36: #{dense_sparse_encode.3} parent=27 // pred_fallthru
        _
      %s364 = sadd.s32 %s200, 2
      %s365 = sld [smem:[#allocation3 + %s364]]
      %p366 = scmp.ge.s32.totalorder %s365, %s190
      %p367 = scmp.lt.s32.totalorder %s365, %s203
      %p368 = pnand %p366, %p367
      %p369 = pneg %p368
      %s370 = sadd.s32 %s208, 2
      %s371 = sld [smem:[#allocation3 + %s370]]
      %p372 = scmp.ge.s32.totalorder %s371, %s190
      %p373 = scmp.lt.s32.totalorder %s371, %s203
      %p374 = pnand %p372, %p373
      %p375 = pneg %p374
      %s376 = sadd.s32 %s215, 2
      %s377 = sld [smem:[#allocation3 + %s376]]
      %p378 = scmp.ge.s32.totalorder %s377, %s190
      %p379 = scmp.lt.s32.totalorder %s377, %s203
      %p380 = pnand %p378, %p379
      %p381 = pneg %p380
      %s382 = sadd.s32 %s222, 2
      %s383 = sld [smem:[#allocation3 + %s382]]
      %p384 = scmp.ge.s32.totalorder %s383, %s190
      %p385 = scmp.lt.s32.totalorder %s383, %s203
      %p386 = pnand %p384, %p385
      %p387 = pneg %p386
      %s388 = sadd.s32 %s229, 2
      %s389 = sld [smem:[#allocation3 + %s388]]
      %p390 = scmp.ge.s32.totalorder %s389, %s190
      %p391 = scmp.lt.s32.totalorder %s389, %s203
      %p392 = pnand %p390, %p391
      %p393 = pneg %p392
      %s394 = sadd.s32 %s236, 2
      %s395 = sld [smem:[#allocation3 + %s394]]
      %p396 = scmp.ge.s32.totalorder %s395, %s190
      %p397 = scmp.lt.s32.totalorder %s395, %s203
      %p398 = pnand %p396, %p397
      %p399 = pneg %p398
      %s400 = sadd.s32 %s243, 2
      %s401 = sld [smem:[#allocation3 + %s400]]
      %p402 = scmp.ge.s32.totalorder %s401, %s190
      %p403 = scmp.lt.s32.totalorder %s401, %s203
      %p404 = pnand %p402, %p403
      %p405 = pneg %p404
      %s406 = sadd.s32 %s250, 2
      %s407 = sld [smem:[#allocation3 + %s406]]
      %p408 = scmp.ge.s32.totalorder %s407, %s190
      %p409 = scmp.lt.s32.totalorder %s407, %s203
      %p410 = pnand %p408, %p409
      %p411 = pneg %p410
      %p412 = por %p369, %p375
      %p413 = por %p412, %p381
      %p414 = por %p413, %p387
      %p415 = por %p414, %p393
      %p416 = por %p415, %p399
      %p417 = por %p416, %p405
      %p418 = por %p417, %p411
      // Predicated region
      $region37: #{dense_sparse_encode.3} parent=27 // pred_check
        %p419 = pneg %p418
      $region38: #{dense_sparse_encode.3} parent=27 // pred_check_branch
        %421 = sbr.rel (%p419) target = $region40
      $region39: #{dense_sparse_encode.3} parent=27 // pred_region
        %v422 = vld [vmem:[%s175] sm:$0xff]
        %v423 = vld [vmem:[%s179] sm:$0xff]
        %424 = vset.pattern.permute.xlu0 2
        %425 = vperm.xlu0 %424, %v422
        %v426 = vpop.permute.xlu0 %425
        %vm427 = vcmp.eq.s32.totalorder %v426, %v195
        %vm428 = vcmp.eq.s32.totalorder %v426, %v196
        %v429 = vld [vmem:[%s188] sm:$0xff]
        %v430 = vld [vmem:[%s188 + $0x8] sm:$0xff]
        %432 = vset.pattern.permute.xlu0 2
        %433 = vperm.xlu0 %432, %v423
        %v434 = vpop.permute.xlu0 %433
        %v436 = vsel %vm427, %v434, 0.0
        %v437 = vsel %vm428, %v434, 0.0
        %v438 = vmax.f32 %v429, %v436
        %v439 = vmax.f32 %v430, %v437
        %440 = vst [vmem:[%s188] sm:$0xff] %v438
        %441 = vst [vmem:[%s188 + $0x8] sm:$0xff] %v439
      $region40: #{dense_sparse_encode.3} parent=27 // pred_fallthru
        _
      %s442 = sadd.s32 %s200, 3
      %s443 = sld [smem:[#allocation3 + %s442]]
      %p444 = scmp.ge.s32.totalorder %s443, %s190
      %p445 = scmp.lt.s32.totalorder %s443, %s203
      %p446 = pnand %p444, %p445
      %p447 = pneg %p446
      %s448 = sadd.s32 %s208, 3
      %s449 = sld [smem:[#allocation3 + %s448]]
      %p450 = scmp.ge.s32.totalorder %s449, %s190
      %p451 = scmp.lt.s32.totalorder %s449, %s203
      %p452 = pnand %p450, %p451
      %p453 = pneg %p452
      %s454 = sadd.s32 %s215, 3
      %s455 = sld [smem:[#allocation3 + %s454]]
      %p456 = scmp.ge.s32.totalorder %s455, %s190
      %p457 = scmp.lt.s32.totalorder %s455, %s203
      %p458 = pnand %p456, %p457
      %p459 = pneg %p458
      %s460 = sadd.s32 %s222, 3
      %s461 = sld [smem:[#allocation3 + %s460]]
      %p462 = scmp.ge.s32.totalorder %s461, %s190
      %p463 = scmp.lt.s32.totalorder %s461, %s203
      %p464 = pnand %p462, %p463
      %p465 = pneg %p464
      %s466 = sadd.s32 %s229, 3
      %s467 = sld [smem:[#allocation3 + %s466]]
      %p468 = scmp.ge.s32.totalorder %s467, %s190
      %p469 = scmp.lt.s32.totalorder %s467, %s203
      %p470 = pnand %p468, %p469
      %p471 = pneg %p470
      %s472 = sadd.s32 %s236, 3
      %s473 = sld [smem:[#allocation3 + %s472]]
      %p474 = scmp.ge.s32.totalorder %s473, %s190
      %p475 = scmp.lt.s32.totalorder %s473, %s203
      %p476 = pnand %p474, %p475
      %p477 = pneg %p476
      %s478 = sadd.s32 %s243, 3
      %s479 = sld [smem:[#allocation3 + %s478]]
      %p480 = scmp.ge.s32.totalorder %s479, %s190
      %p481 = scmp.lt.s32.totalorder %s479, %s203
      %p482 = pnand %p480, %p481
      %p483 = pneg %p482
      %s484 = sadd.s32 %s250, 3
      %s485 = sld [smem:[#allocation3 + %s484]]
      %p486 = scmp.ge.s32.totalorder %s485, %s190
      %p487 = scmp.lt.s32.totalorder %s485, %s203
      %p488 = pnand %p486, %p487
      %p489 = pneg %p488
      %p490 = por %p447, %p453
      %p491 = por %p490, %p459
      %p492 = por %p491, %p465
      %p493 = por %p492, %p471
      %p494 = por %p493, %p477
      %p495 = por %p494, %p483
      %p496 = por %p495, %p489
      // Predicated region
      $region41: #{dense_sparse_encode.3} parent=27 // pred_check
        %p497 = pneg %p496
      $region42: #{dense_sparse_encode.3} parent=27 // pred_check_branch
        %499 = sbr.rel (%p497) target = $region44
      $region43: #{dense_sparse_encode.3} parent=27 // pred_region
        %v500 = vld [vmem:[%s175] sm:$0xff]
        %v501 = vld [vmem:[%s179] sm:$0xff]
        %502 = vset.pattern.permute.xlu0 3
        %503 = vperm.xlu0 %502, %v500
        %v504 = vpop.permute.xlu0 %503
        %vm505 = vcmp.eq.s32.totalorder %v504, %v195
        %vm506 = vcmp.eq.s32.totalorder %v504, %v196
        %v507 = vld [vmem:[%s188] sm:$0xff]
        %v508 = vld [vmem:[%s188 + $0x8] sm:$0xff]
        %510 = vset.pattern.permute.xlu0 3
        %511 = vperm.xlu0 %510, %v501
        %v512 = vpop.permute.xlu0 %511
        %v514 = vsel %vm505, %v512, 0.0
        %v515 = vsel %vm506, %v512, 0.0
        %v516 = vmax.f32 %v507, %v514
        %v517 = vmax.f32 %v508, %v515
        %518 = vst [vmem:[%s188] sm:$0xff] %v516
        %519 = vst [vmem:[%s188 + $0x8] sm:$0xff] %v517
      $region44: #{dense_sparse_encode.3} parent=27 // pred_fallthru
        _
      %s520 = sadd.s32 %s200, 4
      %s521 = sld [smem:[#allocation3 + %s520]]
      %p522 = scmp.ge.s32.totalorder %s521, %s190
      %p523 = scmp.lt.s32.totalorder %s521, %s203
      %p524 = pnand %p522, %p523
      %p525 = pneg %p524
      %s526 = sadd.s32 %s208, 4
      %s527 = sld [smem:[#allocation3 + %s526]]
      %p528 = scmp.ge.s32.totalorder %s527, %s190
      %p529 = scmp.lt.s32.totalorder %s527, %s203
      %p530 = pnand %p528, %p529
      %p531 = pneg %p530
      %s532 = sadd.s32 %s215, 4
      %s533 = sld [smem:[#allocation3 + %s532]]
      %p534 = scmp.ge.s32.totalorder %s533, %s190
      %p535 = scmp.lt.s32.totalorder %s533, %s203
      %p536 = pnand %p534, %p535
      %p537 = pneg %p536
      %s538 = sadd.s32 %s222, 4
      %s539 = sld [smem:[#allocation3 + %s538]]
      %p540 = scmp.ge.s32.totalorder %s539, %s190
      %p541 = scmp.lt.s32.totalorder %s539, %s203
      %p542 = pnand %p540, %p541
      %p543 = pneg %p542
      %s544 = sadd.s32 %s229, 4
      %s545 = sld [smem:[#allocation3 + %s544]]
      %p546 = scmp.ge.s32.totalorder %s545, %s190
      %p547 = scmp.lt.s32.totalorder %s545, %s203
      %p548 = pnand %p546, %p547
      %p549 = pneg %p548
      %s550 = sadd.s32 %s236, 4
      %s551 = sld [smem:[#allocation3 + %s550]]
      %p552 = scmp.ge.s32.totalorder %s551, %s190
      %p553 = scmp.lt.s32.totalorder %s551, %s203
      %p554 = pnand %p552, %p553
      %p555 = pneg %p554
      %s556 = sadd.s32 %s243, 4
      %s557 = sld [smem:[#allocation3 + %s556]]
      %p558 = scmp.ge.s32.totalorder %s557, %s190
      %p559 = scmp.lt.s32.totalorder %s557, %s203
      %p560 = pnand %p558, %p559
      %p561 = pneg %p560
      %s562 = sadd.s32 %s250, 4
      %s563 = sld [smem:[#allocation3 + %s562]]
      %p564 = scmp.ge.s32.totalorder %s563, %s190
      %p565 = scmp.lt.s32.totalorder %s563, %s203
      %p566 = pnand %p564, %p565
      %p567 = pneg %p566
      %p568 = por %p525, %p531
      %p569 = por %p568, %p537
      %p570 = por %p569, %p543
      %p571 = por %p570, %p549
      %p572 = por %p571, %p555
      %p573 = por %p572, %p561
      %p574 = por %p573, %p567
      // Predicated region
      $region45: #{dense_sparse_encode.3} parent=27 // pred_check
        %p575 = pneg %p574
      $region46: #{dense_sparse_encode.3} parent=27 // pred_check_branch
        %577 = sbr.rel (%p575) target = $region48
      $region47: #{dense_sparse_encode.3} parent=27 // pred_region
        %v578 = vld [vmem:[%s175] sm:$0xff]
        %v579 = vld [vmem:[%s179] sm:$0xff]
        %580 = vset.pattern.permute.xlu0 4
        %581 = vperm.xlu0 %580, %v578
        %v582 = vpop.permute.xlu0 %581
        %vm583 = vcmp.eq.s32.totalorder %v582, %v195
        %vm584 = vcmp.eq.s32.totalorder %v582, %v196
        %v585 = vld [vmem:[%s188] sm:$0xff]
        %v586 = vld [vmem:[%s188 + $0x8] sm:$0xff]
        %588 = vset.pattern.permute.xlu0 4
        %589 = vperm.xlu0 %588, %v579
        %v590 = vpop.permute.xlu0 %589
        %v592 = vsel %vm583, %v590, 0.0
        %v593 = vsel %vm584, %v590, 0.0
        %v594 = vmax.f32 %v585, %v592
        %v595 = vmax.f32 %v586, %v593
        %596 = vst [vmem:[%s188] sm:$0xff] %v594
        %597 = vst [vmem:[%s188 + $0x8] sm:$0xff] %v595
      $region48: #{dense_sparse_encode.3} parent=27 // pred_fallthru
        _
      %s598 = sadd.s32 %s200, 5
      %s599 = sld [smem:[#allocation3 + %s598]]
      %p600 = scmp.ge.s32.totalorder %s599, %s190
      %p601 = scmp.lt.s32.totalorder %s599, %s203
      %p602 = pnand %p600, %p601
      %p603 = pneg %p602
      %s604 = sadd.s32 %s208, 5
      %s605 = sld [smem:[#allocation3 + %s604]]
      %p606 = scmp.ge.s32.totalorder %s605, %s190
      %p607 = scmp.lt.s32.totalorder %s605, %s203
      %p608 = pnand %p606, %p607
      %p609 = pneg %p608
      %s610 = sadd.s32 %s215, 5
      %s611 = sld [smem:[#allocation3 + %s610]]
      %p612 = scmp.ge.s32.totalorder %s611, %s190
      %p613 = scmp.lt.s32.totalorder %s611, %s203
      %p614 = pnand %p612, %p613
      %p615 = pneg %p614
      %s616 = sadd.s32 %s222, 5
      %s617 = sld [smem:[#allocation3 + %s616]]
      %p618 = scmp.ge.s32.totalorder %s617, %s190
      %p619 = scmp.lt.s32.totalorder %s617, %s203
      %p620 = pnand %p618, %p619
      %p621 = pneg %p620
      %s622 = sadd.s32 %s229, 5
      %s623 = sld [smem:[#allocation3 + %s622]]
      %p624 = scmp.ge.s32.totalorder %s623, %s190
      %p625 = scmp.lt.s32.totalorder %s623, %s203
      %p626 = pnand %p624, %p625
      %p627 = pneg %p626
      %s628 = sadd.s32 %s236, 5
      %s629 = sld [smem:[#allocation3 + %s628]]
      %p630 = scmp.ge.s32.totalorder %s629, %s190
      %p631 = scmp.lt.s32.totalorder %s629, %s203
      %p632 = pnand %p630, %p631
      %p633 = pneg %p632
      %s634 = sadd.s32 %s243, 5
      %s635 = sld [smem:[#allocation3 + %s634]]
      %p636 = scmp.ge.s32.totalorder %s635, %s190
      %p637 = scmp.lt.s32.totalorder %s635, %s203
      %p638 = pnand %p636, %p637
      %p639 = pneg %p638
      %s640 = sadd.s32 %s250, 5
      %s641 = sld [smem:[#allocation3 + %s640]]
      %p642 = scmp.ge.s32.totalorder %s641, %s190
      %p643 = scmp.lt.s32.totalorder %s641, %s203
      %p644 = pnand %p642, %p643
      %p645 = pneg %p644
      %p646 = por %p603, %p609
      %p647 = por %p646, %p615
      %p648 = por %p647, %p621
      %p649 = por %p648, %p627
      %p650 = por %p649, %p633
      %p651 = por %p650, %p639
      %p652 = por %p651, %p645
      // Predicated region
      $region49: #{dense_sparse_encode.3} parent=27 // pred_check
        %p653 = pneg %p652
      $region50: #{dense_sparse_encode.3} parent=27 // pred_check_branch
        %655 = sbr.rel (%p653) target = $region52
      $region51: #{dense_sparse_encode.3} parent=27 // pred_region
        %v656 = vld [vmem:[%s175] sm:$0xff]
        %v657 = vld [vmem:[%s179] sm:$0xff]
        %658 = vset.pattern.permute.xlu0 5
        %659 = vperm.xlu0 %658, %v656
        %v660 = vpop.permute.xlu0 %659
        %vm661 = vcmp.eq.s32.totalorder %v660, %v195
        %vm662 = vcmp.eq.s32.totalorder %v660, %v196
        %v663 = vld [vmem:[%s188] sm:$0xff]
        %v664 = vld [vmem:[%s188 + $0x8] sm:$0xff]
        %666 = vset.pattern.permute.xlu0 5
        %667 = vperm.xlu0 %666, %v657
        %v668 = vpop.permute.xlu0 %667
        %v670 = vsel %vm661, %v668, 0.0
        %v671 = vsel %vm662, %v668, 0.0
        %v672 = vmax.f32 %v663, %v670
        %v673 = vmax.f32 %v664, %v671
        %674 = vst [vmem:[%s188] sm:$0xff] %v672
        %675 = vst [vmem:[%s188 + $0x8] sm:$0xff] %v673
      $region52: #{dense_sparse_encode.3} parent=27 // pred_fallthru
        _
      %s676 = sadd.s32 %s200, 6
      %s677 = sld [smem:[#allocation3 + %s676]]
      %p678 = scmp.ge.s32.totalorder %s677, %s190
      %p679 = scmp.lt.s32.totalorder %s677, %s203
      %p680 = pnand %p678, %p679
      %p681 = pneg %p680
      %s682 = sadd.s32 %s208, 6
      %s683 = sld [smem:[#allocation3 + %s682]]
      %p684 = scmp.ge.s32.totalorder %s683, %s190
      %p685 = scmp.lt.s32.totalorder %s683, %s203
      %p686 = pnand %p684, %p685
      %p687 = pneg %p686
      %s688 = sadd.s32 %s215, 6
      %s689 = sld [smem:[#allocation3 + %s688]]
      %p690 = scmp.ge.s32.totalorder %s689, %s190
      %p691 = scmp.lt.s32.totalorder %s689, %s203
      %p692 = pnand %p690, %p691
      %p693 = pneg %p692
      %s694 = sadd.s32 %s222, 6
      %s695 = sld [smem:[#allocation3 + %s694]]
      %p696 = scmp.ge.s32.totalorder %s695, %s190
      %p697 = scmp.lt.s32.totalorder %s695, %s203
      %p698 = pnand %p696, %p697
      %p699 = pneg %p698
      %s700 = sadd.s32 %s229, 6
      %s701 = sld [smem:[#allocation3 + %s700]]
      %p702 = scmp.ge.s32.totalorder %s701, %s190
      %p703 = scmp.lt.s32.totalorder %s701, %s203
      %p704 = pnand %p702, %p703
      %p705 = pneg %p704
      %s706 = sadd.s32 %s236, 6
      %s707 = sld [smem:[#allocation3 + %s706]]
      %p708 = scmp.ge.s32.totalorder %s707, %s190
      %p709 = scmp.lt.s32.totalorder %s707, %s203
      %p710 = pnand %p708, %p709
      %p711 = pneg %p710
      %s712 = sadd.s32 %s243, 6
      %s713 = sld [smem:[#allocation3 + %s712]]
      %p714 = scmp.ge.s32.totalorder %s713, %s190
      %p715 = scmp.lt.s32.totalorder %s713, %s203
      %p716 = pnand %p714, %p715
      %p717 = pneg %p716
      %s718 = sadd.s32 %s250, 6
      %s719 = sld [smem:[#allocation3 + %s718]]
      %p720 = scmp.ge.s32.totalorder %s719, %s190
      %p721 = scmp.lt.s32.totalorder %s719, %s203
      %p722 = pnand %p720, %p721
      %p723 = pneg %p722
      %p724 = por %p681, %p687
      %p725 = por %p724, %p693
      %p726 = por %p725, %p699
      %p727 = por %p726, %p705
      %p728 = por %p727, %p711
      %p729 = por %p728, %p717
      %p730 = por %p729, %p723
      // Predicated region
      $region53: #{dense_sparse_encode.3} parent=27 // pred_check
        %p731 = pneg %p730
      $region54: #{dense_sparse_encode.3} parent=27 // pred_check_branch
        %733 = sbr.rel (%p731) target = $region56
      $region55: #{dense_sparse_encode.3} parent=27 // pred_region
        %v734 = vld [vmem:[%s175] sm:$0xff]
        %v735 = vld [vmem:[%s179] sm:$0xff]
        %736 = vset.pattern.permute.xlu0 6
        %737 = vperm.xlu0 %736, %v734
        %v738 = vpop.permute.xlu0 %737
        %vm739 = vcmp.eq.s32.totalorder %v738, %v195
        %vm740 = vcmp.eq.s32.totalorder %v738, %v196
        %v741 = vld [vmem:[%s188] sm:$0xff]
        %v742 = vld [vmem:[%s188 + $0x8] sm:$0xff]
        %744 = vset.pattern.permute.xlu0 6
        %745 = vperm.xlu0 %744, %v735
        %v746 = vpop.permute.xlu0 %745
        %v748 = vsel %vm739, %v746, 0.0
        %v749 = vsel %vm740, %v746, 0.0
        %v750 = vmax.f32 %v741, %v748
        %v751 = vmax.f32 %v742, %v749
        %752 = vst [vmem:[%s188] sm:$0xff] %v750
        %753 = vst [vmem:[%s188 + $0x8] sm:$0xff] %v751
      $region56: #{dense_sparse_encode.3} parent=27 // pred_fallthru
        _
      %s754 = sadd.s32 %s200, 7
      %s755 = sld [smem:[#allocation3 + %s754]]
      %p756 = scmp.ge.s32.totalorder %s755, %s190
      %p757 = scmp.lt.s32.totalorder %s755, %s203
      %p758 = pnand %p756, %p757
      %p759 = pneg %p758
      %s760 = sadd.s32 %s208, 7
      %s761 = sld [smem:[#allocation3 + %s760]]
      %p762 = scmp.ge.s32.totalorder %s761, %s190
      %p763 = scmp.lt.s32.totalorder %s761, %s203
      %p764 = pnand %p762, %p763
      %p765 = pneg %p764
      %s766 = sadd.s32 %s215, 7
      %s767 = sld [smem:[#allocation3 + %s766]]
      %p768 = scmp.ge.s32.totalorder %s767, %s190
      %p769 = scmp.lt.s32.totalorder %s767, %s203
      %p770 = pnand %p768, %p769
      %p771 = pneg %p770
      %s772 = sadd.s32 %s222, 7
      %s773 = sld [smem:[#allocation3 + %s772]]
      %p774 = scmp.ge.s32.totalorder %s773, %s190
      %p775 = scmp.lt.s32.totalorder %s773, %s203
      %p776 = pnand %p774, %p775
      %p777 = pneg %p776
      %s778 = sadd.s32 %s229, 7
      %s779 = sld [smem:[#allocation3 + %s778]]
      %p780 = scmp.ge.s32.totalorder %s779, %s190
      %p781 = scmp.lt.s32.totalorder %s779, %s203
      %p782 = pnand %p780, %p781
      %p783 = pneg %p782
      %s784 = sadd.s32 %s236, 7
      %s785 = sld [smem:[#allocation3 + %s784]]
      %p786 = scmp.ge.s32.totalorder %s785, %s190
      %p787 = scmp.lt.s32.totalorder %s785, %s203
      %p788 = pnand %p786, %p787
      %p789 = pneg %p788
      %s790 = sadd.s32 %s243, 7
      %s791 = sld [smem:[#allocation3 + %s790]]
      %p792 = scmp.ge.s32.totalorder %s791, %s190
      %p793 = scmp.lt.s32.totalorder %s791, %s203
      %p794 = pnand %p792, %p793
      %p795 = pneg %p794
      %s796 = sadd.s32 %s250, 7
      %s797 = sld [smem:[#allocation3 + %s796]]
      %p798 = scmp.ge.s32.totalorder %s797, %s190
      %p799 = scmp.lt.s32.totalorder %s797, %s203
      %p800 = pnand %p798, %p799
      %p801 = pneg %p800
      %p802 = por %p759, %p765
      %p803 = por %p802, %p771
      %p804 = por %p803, %p777
      %p805 = por %p804, %p783
      %p806 = por %p805, %p789
      %p807 = por %p806, %p795
      %p808 = por %p807, %p801
      // Predicated region
      $region57: #{dense_sparse_encode.3} parent=27 // pred_check
        %p809 = pneg %p808
      $region58: #{dense_sparse_encode.3} parent=27 // pred_check_branch
        %811 = sbr.rel (%p809) target = $region60
      $region59: #{dense_sparse_encode.3} parent=27 // pred_region
        %v812 = vld [vmem:[%s175] sm:$0xff]
        %v813 = vld [vmem:[%s179] sm:$0xff]
        %814 = vset.pattern.permute.xlu0 7
        %815 = vperm.xlu0 %814, %v812
        %v816 = vpop.permute.xlu0 %815
        %vm817 = vcmp.eq.s32.totalorder %v816, %v195
        %vm818 = vcmp.eq.s32.totalorder %v816, %v196
        %v819 = vld [vmem:[%s188] sm:$0xff]
        %v820 = vld [vmem:[%s188 + $0x8] sm:$0xff]
        %822 = vset.pattern.permute.xlu0 7
        %823 = vperm.xlu0 %822, %v813
        %v824 = vpop.permute.xlu0 %823
        %v826 = vsel %vm817, %v824, 0.0
        %v827 = vsel %vm818, %v824, 0.0
        %v828 = vmax.f32 %v819, %v826
        %v829 = vmax.f32 %v820, %v827
        %830 = vst [vmem:[%s188] sm:$0xff] %v828
        %831 = vst [vmem:[%s188 + $0x8] sm:$0xff] %v829
      $region60: #{dense_sparse_encode.3} parent=27 // pred_fallthru
        _
      %p832 = scmp.eq.s32.totalorder %s27, 0
      // Predicated region
      $region61: #{dense_sparse_encode.3} parent=27 // pred_check
        %p833 = pneg %p832
      $region62: #{dense_sparse_encode.3} parent=27 // pred_check_branch
        %835 = sbr.rel (%p833) target = $region64
      $region63: #{dense_sparse_encode.3} parent=27 // pred_region
        %vm836 = vcmp.eq.s32.totalorder %v192, 0
        %vm837 = vcmp.eq.s32.totalorder %v193, 0
        %vm838 = vcmp.eq.s32.totalorder %v192, 1
        %vm839 = vcmp.eq.s32.totalorder %v193, 1
        %vm840 = vmor %vm836, %vm838
        %vm841 = vmor %vm837, %vm839
        %vm842 = vcmp.eq.s32.totalorder %v192, 2
        %vm843 = vcmp.eq.s32.totalorder %v193, 2
        %vm844 = vmor %vm840, %vm842
        %vm845 = vmor %vm841, %vm843
        %vm846 = vcmp.eq.s32.totalorder %v192, 3
        %vm847 = vcmp.eq.s32.totalorder %v193, 3
        %vm848 = vmor %vm844, %vm846
        %vm849 = vmor %vm845, %vm847
        %v850 = vld [vmem:[%s188] sm:$0xff]
        %v851 = vld [vmem:[%s188 + $0x8] sm:$0xff]
        %v852 = vsel %vm848, 1, 0
        %v853 = vsel %vm849, 1, 0
        %vm854 = vcmp.eq.s32.totalorder %v852, 1
        %vm855 = vcmp.eq.s32.totalorder %v853, 1
        %v856 = vsel %vm854, 0.0, %v850
        %v857 = vsel %vm855, 0.0, %v851
        %858 = vst [vmem:[%s188] sm:$0xff] %v856
        %859 = vst [vmem:[%s188 + $0x8] sm:$0xff] %v857
      $region64: #{dense_sparse_encode.3} parent=27 // pred_fallthru
        _
      %s860 = smul.u32 2, %s27
      %p861 = scmp.lt.s32.totalorder %s26, 0
      %s862 = scalar_select %p861, %s26, 0
      %p863 = scmp.lt.s32.totalorder %s860, 3
      %s864 = scalar_select %p863, %s860, 3
      %s865 = smul.addr %s862, 4
      %s866 = sadd.s32 %s864, %s865
      %s867 = smul.addr %s866, 8
      %s868 = scalar_lea.vmem %s3, %s867
      // Predicated region
      $region65: #{dense_sparse_encode.3} parent=27 // pred_check
        %p869 = pneg %p106
      $region66: #{dense_sparse_encode.3} parent=27 // pred_check_branch
        %871 = sbr.rel (%p869) target = $region68
      $region67: #{dense_sparse_encode.3} parent=27 // pred_region
        %s872 = smul.u32 2, %s27
      $region68: #{dense_sparse_encode.3} parent=27 // pred_fallthru
        _
    $region28: #{dense_sparse_encode.3} parent=5 // pred_fallthru
      _
    %p873 = scmp.le.s32.totalorder 2, %s17
    // Predicated region
    $region69: #{dense_sparse_encode.3} parent=5 // pred_check
      %p874 = pneg %p873
    $region70: #{dense_sparse_encode.3} parent=5 // pred_check_branch
      %876 = sbr.rel (%p874) target = $region72
    $region71: #{dense_sparse_encode.3} parent=5 // pred_region
      %s877 = ssub.s32 %s17, 2
      // Predicated region
      $region73: #{dense_sparse_encode.3} parent=71 // pred_check
        %p878 = pneg %p112
      $region74: #{dense_sparse_encode.3} parent=71 // pred_check_branch
        %880 = sbr.rel (%p878) target = $region76
      $region75: #{dense_sparse_encode.3} parent=71 // pred_region
        %s881 = smul.u32 2, %s29
        %p882 = scmp.lt.s32.totalorder %s28, 0
        %s883 = scalar_select %p882, %s28, 0
        %p884 = scmp.lt.s32.totalorder %s881, 3
        %s885 = scalar_select %p884, %s881, 3
        %s886 = smul.addr %s883, 4
        %s887 = sadd.s32 %s885, %s886
        %s888 = smul.addr %s887, 8
        %s889 = scalar_lea.vmem %s3, %s888
      $region76: #{dense_sparse_encode.3} parent=71 // pred_fallthru
        _
    $region72: #{dense_sparse_encode.3} parent=5 // pred_fallthru
      _
  $region6: #{dense_sparse_encode.3} parent=0 // loop_footer
    %s21 = sadd.s32 1, %s17
  $region7: #{dense_sparse_encode.3} parent=0 // loop_footer_branch
    %16 = sbr.rel target = $region3
  $region8: #{dense_sparse_encode.3} parent=0 // loop_exit
    _

</llo_original>
